<compile_context>
chip_gen: v7x
topology: tpu7x:2x2x1
jax: 0.10.0
libtpu: 0.0.40
codegen_flags: <defaults>
</compile_context>

<pallas_src>
import functools
import math

import jax
import jax.numpy as jnp
from jax.experimental import pallas as pl
from jax.experimental.pallas import tpu as pltpu


def _layer_norm(v, gamma, beta, eps=1e-5):
    # PyTorch LayerNorm over the last dim: biased variance, eps inside rsqrt.
    mu = jnp.mean(v, axis=-1, keepdims=True)
    var = jnp.mean((v - mu) ** 2, axis=-1, keepdims=True)
    return (v - mu) * jax.lax.rsqrt(var + eps) * gamma + beta


def _encoder_block_kernel(
    # scalar-prefetch ref (SMEM)
    valid_lens_ref,
    # inputs (VMEM)
    x_ref, wq_ref, wk_ref, wv_ref, wo_ref,
    ln1_g_ref, ln1_b_ref,
    w1_ref, b1_ref, w2_ref, b2_ref,
    ln2_g_ref, ln2_b_ref,
    # output
    out_ref,
    # scratch (VMEM)
    q_sc, k_sc, v_sc, ctx_sc,
    *, num_heads, batch_tile, seq_len, mxu_dtype,
):
    g = pl.program_id(0)
    Bt, S = batch_tile, seq_len
    D = x_ref.shape[-1]
    dh = D // num_heads
    scale = 1.0 / math.sqrt(dh)
    approx_recip = mxu_dtype != jnp.float32   # EUP path once bf16 tolerance applies

    x = x_ref[...]                            # (Bt*S, D) f32 residual path
    x_mx = x.astype(mxu_dtype)

    # Q/K/V projections on the whole flattened slab (use_bias=False).  Results
    # staged in VMEM scratch (mxu_dtype) so the unrolled Bt x H loop slices from
    # refs instead of holding three whole-slab values live across the unroll.
    q_sc[...] = jnp.dot(x_mx, wq_ref[...], preferred_element_type=jnp.float32).astype(mxu_dtype)
    k_sc[...] = jnp.dot(x_mx, wk_ref[...], preferred_element_type=jnp.float32).astype(mxu_dtype)
    v_sc[...] = jnp.dot(x_mx, wv_ref[...], preferred_element_type=jnp.float32).astype(mxu_dtype)

    # Key-position index shared by every query row of a batch element.
    key_pos = jax.lax.broadcasted_iota(jnp.int32, (1, S), 1)
    contract_last = (((1,), (1,)), ((), ()))  # (S,dh) x (S,dh) -> (S,S); no explicit K transpose
    # TODO(synk): for long S, tile KV with an online (flash-style) softmax instead of
    # materialising the full (S, S) score matrix per head.

    for i in range(Bt):                       # static unroll over batch elements in the tile
        vl = valid_lens_ref[g * Bt + i]
        kmask = key_pos < vl                  # (1, S) key mask (d2l sequence_mask)
        rows = slice(i * S, (i + 1) * S)      # static sublane slice
        for h in range(num_heads):            # static unroll over heads
            cols = slice(h * dh, (h + 1) * dh)
            s = jax.lax.dot_general(
                q_sc[rows, cols], k_sc[rows, cols], contract_last,
                preferred_element_type=jnp.float32) * scale
            s = jnp.where(kmask, s, -1e6)     # masked-softmax fill value
            s = s - jnp.max(s, axis=-1, keepdims=True)
            e = jnp.exp(s)
            p = e * pl.reciprocal(jnp.sum(e, axis=-1, keepdims=True), approx=approx_recip)
            # TODO(synk): attention dropout omitted (eval mode / dropout = identity).
            head_out = jnp.dot(p.astype(mxu_dtype), v_sc[rows, cols],
                               preferred_element_type=jnp.float32)      # (S, dh)
            # Write each head's context at its lane slice; the output projection is
            # done once below with the full Wo (full MXU contraction depth).
            ctx_sc[rows, cols] = head_out.astype(mxu_dtype)

    # Single full-depth output projection for the whole slab.
    attn = jnp.dot(ctx_sc[...], wo_ref[...], preferred_element_type=jnp.float32)

    # AddNorm 1 (dropout = identity in eval mode).
    y = _layer_norm(attn + x, ln1_g_ref[...], ln1_b_ref[...])

    # Position-wise FFN + AddNorm 2, on the flattened slab.
    h1 = jnp.maximum(
        jnp.dot(y.astype(mxu_dtype), w1_ref[...], preferred_element_type=jnp.float32)
        + b1_ref[...], 0.0)
    ffn = jnp.dot(h1.astype(mxu_dtype), w2_ref[...], preferred_element_type=jnp.float32) + b2_ref[...]
    out_ref[...] = _layer_norm(ffn + y, ln2_g_ref[...], ln2_b_ref[...]).astype(out_ref.dtype)


def _vmem_capacity_bytes():
    try:
        return int(pltpu.get_tpu_info().vmem_capacity_bytes)
    except Exception:
        return 64 * 2 ** 20        # conservative fallback (v7x per-TC VMEM)


def _pick_target_rows(D, F, w_itemsize):
    """Row-slab size that fits comfortably in the scoped-VMEM budget."""
    budget = min(_vmem_capacity_bytes() // 2, 48 * 2 ** 20)
    weight_bytes = 2 * w_itemsize * (4 * D * D + 2 * D * F)   # double-buffered weights
    per_row = (2 * 2 * 4 * D          # x + out blocks, f32, double-buffered
               + 4 * w_itemsize * D   # q/k/v/ctx scratch
               + 4 * (2 * D + F))     # live f32 intermediates (attn / y / h1)
    avail = max(budget - weight_bytes, 1 << 20)
    return int(max(8, min(2048, avail // max(per_row, 1))))


def _pick_batch_tile(batch, seq, target_rows):
    """Largest divisor of batch that (a) leaves >= 2 grid steps when possible
    (v7x megacore sharding + DMA/compute overlap), (b) keeps Bt*S rows within the
    VMEM-derived target, and (c) satisfies the (8, .) sublane tiling rule."""
    cap = max(1, min(batch if batch == 1 else batch // 2,
                     max(1, target_rows // max(seq, 1))))
    for bt in range(cap, 0, -1):
        if batch % bt == 0 and (bt * seq) % 8 == 0:
            return bt
    return batch                      # single step: block == full array, always legal


def encoder_block(x, valid_lens, params, num_heads, *, mxu_dtype=jnp.bfloat16):
    B, S, D = x.shape
    assert D % num_heads == 0
    F = params["w1"].shape[1]
    w_itemsize = jnp.dtype(mxu_dtype).itemsize

    Bt = _pick_batch_tile(B, S, _pick_target_rows(D, F, w_itemsize))
    rows = Bt * S
    grid = (B // Bt,)

    x_flat = x.reshape(B * S, D)      # wrapper-side reshape: layout plumbing only

    # Weights stored (and DMA'd) in the MXU operand dtype: halves weight HBM
    # traffic and VMEM footprint in bf16 mode.  Biases / LayerNorm params and the
    # residual path stay f32; every matmul accumulates in f32.
    to_mx = lambda w: w.astype(mxu_dtype)
    wq, wk, wv, wo = map(to_mx, (params["wq"], params["wk"], params["wv"], params["wo"]))
    w1, w2 = to_mx(params["w1"]), to_mx(params["w2"])

    # Constant-index weight blocks: the same VMEM block is reused every grid step
    # (never re-DMA'd).
    # TODO(synk): on v7x (64 MiB VMEM) single-buffer these (pl.Buffered(1) or manual
    # staging) to reclaim the second weight buffer for bigger row tiles.
    full = lambda shape: pl.BlockSpec(shape, lambda g, vl: (0,) * len(shape))

    grid_spec = pltpu.PrefetchScalarGridSpec(
        num_scalar_prefetch=1,
        grid=grid,
        in_specs=[
            pl.BlockSpec((rows, D), lambda g, vl: (g, 0)),           # X (flattened)
            full((D, D)), full((D, D)), full((D, D)), full((D, D)),  # Wq Wk Wv Wo
            full((1, D)), full((1, D)),                              # ln1 gamma / beta
            full((D, F)), full((1, F)),                              # ffn W1 / b1
            full((F, D)), full((1, D)),                              # ffn W2 / b2
            full((1, D)), full((1, D)),                              # ln2 gamma / beta
        ],
        out_specs=pl.BlockSpec((rows, D), lambda g, vl: (g, 0)),
        scratch_shapes=[pltpu.VMEM((rows, D), mxu_dtype)] * 4,       # q / k / v / ctx
    )

    kernel = functools.partial(
        _encoder_block_kernel,
        num_heads=num_heads, batch_tile=Bt, seq_len=S, mxu_dtype=mxu_dtype)

    flops = int(B * S * (8 * D * D + 4 * S * D + 4 * D * F))
    transcendentals = int(B * num_heads * S * S)
    bytes_accessed = int(4 * 2 * B * S * D
                         + w_itemsize * (4 * D * D + 2 * D * F)
                         + 4 * (5 * D + F))

    # Explicit scoped-VMEM limit derived from the actual working set (2x headroom),
    # clamped to [32 MiB, 64 MiB] so the same request is legal on v5e/v6e (128 MiB
    # physical VMEM) and v7x (64 MiB physical VMEM).
    working_set = (2 * w_itemsize * (4 * D * D + 2 * D * F)   # weights, double-buffered
                   + 2 * 4 * rows * D * 2                     # x + out row blocks
                   + 4 * rows * D * w_itemsize                # q/k/v/ctx scratch
                   + 4 * rows * (2 * D + F))                  # live intermediates
    vmem_limit = int(min(64 * 2 ** 20, max(32 * 2 ** 20, 2 * working_set)))

    out_flat = pl.pallas_call(
        kernel,
        out_shape=jax.ShapeDtypeStruct((B * S, D), x.dtype),
        grid_spec=grid_spec,
        compiler_params=pltpu.CompilerParams(
            dimension_semantics=("parallel",),    # shard batch grid steps across TCs
            vmem_limit_bytes=vmem_limit),
        cost_estimate=pl.CostEstimate(
            flops=flops, transcendentals=transcendentals,
            bytes_accessed=bytes_accessed),
    )(
        valid_lens, x_flat,
        wq, wk, wv, wo,
        params["ln1_g"], params["ln1_b"],
        w1, params["b1"], w2, params["b2"],
        params["ln2_g"], params["ln2_b"],
    )
    return out_flat.reshape(B, S, D)


def encoder_block_ref(x, valid_lens, params, num_heads):
    """Pure-JAX f32 reference for numerical verification."""
    B, S, D = x.shape
    dh = D // num_heads
    q = x @ params["wq"]
    k = x @ params["wk"]
    v = x @ params["wv"]

    def split(t):  # (B,S,D) -> (B,H,S,dh)
        return t.reshape(B, S, num_heads, dh).transpose(0, 2, 1, 3)

    qh, kh, vh = split(q), split(k), split(v)
    s = jnp.einsum("bhqd,bhkd->bhqk", qh, kh) / math.sqrt(dh)
    col = jnp.arange(S)[None, None, None, :]
    mask = col < valid_lens[:, None, None, None]
    s = jnp.where(mask, s, -1e6)
    p = jax.nn.softmax(s, axis=-1)
    o = jnp.einsum("bhqk,bhkd->bhqd", p, vh).transpose(0, 2, 1, 3).reshape(B, S, D)
    attn = o @ params["wo"]

    def ln(t, g, b):
        mu = jnp.mean(t, axis=-1, keepdims=True)
        var = jnp.mean((t - mu) ** 2, axis=-1, keepdims=True)
        return (t - mu) * jax.lax.rsqrt(var + 1e-5) * g + b

    y = ln(attn + x, params["ln1_g"][0], params["ln1_b"][0])
    ffn = jnp.maximum(y @ params["w1"] + params["b1"][0], 0.0) @ params["w2"] + params["b2"][0]
    return ln(ffn + y, params["ln2_g"][0], params["ln2_b"][0])


if __name__ == "__main__":
    # Small shapes consistent with the module: B=2, seq=8, hidden=32, heads=4, ffn_hidden=64.
    B, S, D, H, F = 2, 8, 32, 4, 64

    key = jax.random.PRNGKey(0)
    ks = jax.random.split(key, 8)
    scale = 0.02
    params = {
        "wq": jax.random.normal(ks[0], (D, D), jnp.float32) * scale,
        "wk": jax.random.normal(ks[1], (D, D), jnp.float32) * scale,
        "wv": jax.random.normal(ks[2], (D, D), jnp.float32) * scale,
        "wo": jax.random.normal(ks[3], (D, D), jnp.float32) * scale,
        "ln1_g": jnp.ones((1, D), jnp.float32),
        "ln1_b": jnp.zeros((1, D), jnp.float32),
        "w1": jax.random.normal(ks[4], (D, F), jnp.float32) * scale,
        "b1": jnp.zeros((1, F), jnp.float32),
        "w2": jax.random.normal(ks[5], (F, D), jnp.float32) * scale,
        "b2": jnp.zeros((1, D), jnp.float32),
        "ln2_g": jnp.ones((1, D), jnp.float32),
        "ln2_b": jnp.zeros((1, D), jnp.float32),
    }

    x = jax.random.normal(ks[6], (B, S, D), jnp.float32)
    valid_lens = jnp.array([6, 3], dtype=jnp.int32)   # shape (B,)

    # bf16 MXU operands + bf16-stored weights (production default); tolerance is
    # loosened vs the f32 reference accordingly.
    out = encoder_block(x, valid_lens, params, num_heads=H)
    out = jax.block_until_ready(out)

    ref = encoder_block_ref(x, valid_lens, params, num_heads=H)
    assert out.shape == (B, S, D)
    assert jnp.allclose(out, ref, rtol=2e-2, atol=2e-2), "mismatch vs pure-JAX reference"

    print("KERNEL_OK")
</pallas_src>

<mosaic_0001>
module attributes {stable_mosaic.version = 11 : i64} {
  func.func @_encoder_block_kernel(%arg0: i32, %arg1: memref<2xi32, #tpu.memory_space<smem>>, %arg2: memref<8x32xf32, #tpu.memory_space<vmem>>, %arg3: memref<32x32xbf16, #tpu.memory_space<vmem>>, %arg4: memref<32x32xbf16, #tpu.memory_space<vmem>>, %arg5: memref<32x32xbf16, #tpu.memory_space<vmem>>, %arg6: memref<32x32xbf16, #tpu.memory_space<vmem>>, %arg7: memref<1x32xf32, #tpu.memory_space<vmem>>, %arg8: memref<1x32xf32, #tpu.memory_space<vmem>>, %arg9: memref<32x64xbf16, #tpu.memory_space<vmem>>, %arg10: memref<1x64xf32, #tpu.memory_space<vmem>>, %arg11: memref<64x32xbf16, #tpu.memory_space<vmem>>, %arg12: memref<1x32xf32, #tpu.memory_space<vmem>>, %arg13: memref<1x32xf32, #tpu.memory_space<vmem>>, %arg14: memref<1x32xf32, #tpu.memory_space<vmem>>, %arg15: memref<8x32xf32, #tpu.memory_space<vmem>>, %arg16: memref<8x32xbf16, #tpu.memory_space<vmem>>, %arg17: memref<8x32xbf16, #tpu.memory_space<vmem>>, %arg18: memref<8x32xbf16, #tpu.memory_space<vmem>>, %arg19: memref<8x32xbf16, #tpu.memory_space<vmem>>) attributes {dimension_semantics = [#tpu.dimension_semantics<parallel>], iteration_bounds = array<i64: 2>, scalar_prefetch = 1 : i64, scratch_operands = 4 : i64, tpu.core_type = #tpu.core_type<tc>, window_params = [{transform_indices = @transform_0, window_bounds = array<i64: 8, 32>}, {pipeline_mode = #tpu.pipeline_mode<synchronous>, transform_indices = @transform_1, window_bounds = array<i64: 32, 32>}, {pipeline_mode = #tpu.pipeline_mode<synchronous>, transform_indices = @transform_2, window_bounds = array<i64: 32, 32>}, {pipeline_mode = #tpu.pipeline_mode<synchronous>, transform_indices = @transform_3, window_bounds = array<i64: 32, 32>}, {pipeline_mode = #tpu.pipeline_mode<synchronous>, transform_indices = @transform_4, window_bounds = array<i64: 32, 32>}, {pipeline_mode = #tpu.pipeline_mode<synchronous>, transform_indices = @transform_5, window_bounds = array<i64: 1, 32>}, {pipeline_mode = #tpu.pipeline_mode<synchronous>, transform_indices = @transform_6, window_bounds = array<i64: 1, 32>}, {pipeline_mode = #tpu.pipeline_mode<synchronous>, transform_indices = @transform_7, window_bounds = array<i64: 32, 64>}, {pipeline_mode = #tpu.pipeline_mode<synchronous>, transform_indices = @transform_8, window_bounds = array<i64: 1, 64>}, {pipeline_mode = #tpu.pipeline_mode<synchronous>, transform_indices = @transform_9, window_bounds = array<i64: 64, 32>}, {pipeline_mode = #tpu.pipeline_mode<synchronous>, transform_indices = @transform_10, window_bounds = array<i64: 1, 32>}, {pipeline_mode = #tpu.pipeline_mode<synchronous>, transform_indices = @transform_11, window_bounds = array<i64: 1, 32>}, {pipeline_mode = #tpu.pipeline_mode<synchronous>, transform_indices = @transform_12, window_bounds = array<i64: 1, 32>}, {transform_indices = @transform_13, window_bounds = array<i64: 8, 32>}]} {
    %c0 = arith.constant 0 : index
    %c0_0 = arith.constant 0 : index
    %0 = vector.load %arg2[%c0, %c0_0] : memref<8x32xf32, #tpu.memory_space<vmem>>, vector<8x32xf32>
    %1 = arith.truncf %0 : vector<8x32xf32> to vector<8x32xbf16>
    %c0_1 = arith.constant 0 : index
    %c0_2 = arith.constant 0 : index
    %2 = vector.load %arg3[%c0_1, %c0_2] : memref<32x32xbf16, #tpu.memory_space<vmem>>, vector<32x32xbf16>
    %cst = arith.constant dense<0.000000e+00> : vector<8x32xf32>
    %3 = tpu.matmul %1, %2, %cst {dimension_numbers = #tpu.dot_dimension_numbers<[1], [0], [0], [1], [0, 0, 1, 1], [], []>} : vector<8x32xbf16>, vector<32x32xbf16>, vector<8x32xf32> -> vector<8x32xf32>
    %4 = arith.truncf %3 : vector<8x32xf32> to vector<8x32xbf16>
    %c0_3 = arith.constant 0 : index
    %c0_4 = arith.constant 0 : index
    %5 = vector.load %arg16[%c0_3, %c0_4] : memref<8x32xbf16, #tpu.memory_space<vmem>>, vector<8x32xbf16>
    tpu.vector_store %arg16[%c0_3, %c0_4], %4 {strides = array<i32>} : memref<8x32xbf16, #tpu.memory_space<vmem>>, vector<8x32xbf16>,
    %c0_5 = arith.constant 0 : index
    %c0_6 = arith.constant 0 : index
    %6 = vector.load %arg4[%c0_5, %c0_6] : memref<32x32xbf16, #tpu.memory_space<vmem>>, vector<32x32xbf16>
    %cst_7 = arith.constant dense<0.000000e+00> : vector<8x32xf32>
    %7 = tpu.matmul %1, %6, %cst_7 {dimension_numbers = #tpu.dot_dimension_numbers<[1], [0], [0], [1], [0, 0, 1, 1], [], []>} : vector<8x32xbf16>, vector<32x32xbf16>, vector<8x32xf32> -> vector<8x32xf32>
    %8 = arith.truncf %7 : vector<8x32xf32> to vector<8x32xbf16>
    %c0_8 = arith.constant 0 : index
    %c0_9 = arith.constant 0 : index
    %9 = vector.load %arg17[%c0_8, %c0_9] : memref<8x32xbf16, #tpu.memory_space<vmem>>, vector<8x32xbf16>
    tpu.vector_store %arg17[%c0_8, %c0_9], %8 {strides = array<i32>} : memref<8x32xbf16, #tpu.memory_space<vmem>>, vector<8x32xbf16>,
    %c0_10 = arith.constant 0 : index
    %c0_11 = arith.constant 0 : index
    %10 = vector.load %arg5[%c0_10, %c0_11] : memref<32x32xbf16, #tpu.memory_space<vmem>>, vector<32x32xbf16>
    %cst_12 = arith.constant dense<0.000000e+00> : vector<8x32xf32>
    %11 = tpu.matmul %1, %10, %cst_12 {dimension_numbers = #tpu.dot_dimension_numbers<[1], [0], [0], [1], [0, 0, 1, 1], [], []>} : vector<8x32xbf16>, vector<32x32xbf16>, vector<8x32xf32> -> vector<8x32xf32>
    %12 = arith.truncf %11 : vector<8x32xf32> to vector<8x32xbf16>
    %c0_13 = arith.constant 0 : index
    %c0_14 = arith.constant 0 : index
    %13 = vector.load %arg18[%c0_13, %c0_14] : memref<8x32xbf16, #tpu.memory_space<vmem>>, vector<8x32xbf16>
    tpu.vector_store %arg18[%c0_13, %c0_14], %12 {strides = array<i32>} : memref<8x32xbf16, #tpu.memory_space<vmem>>, vector<8x32xbf16>,
    %14 = tpu.iota {dimensions = array<i32: 1>} : vector<1x8xi32>
    %c1_i32 = arith.constant 1 : i32
    %15 = arith.muli %arg0, %c1_i32 : i32
    %c0_i32 = arith.constant 0 : i32
    %16 = arith.addi %15, %c0_i32 : i32
    %17 = arith.index_cast %16 : i32 to index
    %18 = memref.load %arg1[%17] : memref<2xi32, #tpu.memory_space<smem>>
    %19 = vector.broadcast %18 : i32 to vector<1x8xi32>
    %20 = arith.cmpi slt, %14, %19 : vector<1x8xi32>
    %c0_15 = arith.constant 0 : index
    %c0_16 = arith.constant 0 : index
    %21 = vector.load %arg16[%c0_15, %c0_16] : memref<8x32xbf16, #tpu.memory_space<vmem>>, vector<8x8xbf16>
    %c0_17 = arith.constant 0 : index
    %c0_18 = arith.constant 0 : index
    %22 = vector.load %arg17[%c0_17, %c0_18] : memref<8x32xbf16, #tpu.memory_space<vmem>>, vector<8x8xbf16>
    %cst_19 = arith.constant dense<0.000000e+00> : vector<8x8xf32>
    %23 = tpu.matmul %21, %22, %cst_19 {dimension_numbers = #tpu.dot_dimension_numbers<[1], [1], [0], [0], [0, 0, 1, 0], [], []>} : vector<8x8xbf16>, vector<8x8xbf16>, vector<8x8xf32> -> vector<8x8xf32>
    %cst_20 = arith.constant 0.353553385 : f32
    %24 = vector.broadcast %cst_20 : f32 to vector<8x8xf32>
    %25 = arith.mulf %23, %24 : vector<8x8xf32>
    %cst_21 = arith.constant -1.000000e+06 : f32
    %26 = vector.shape_cast %20 : vector<1x8xi1> to vector<1x8xi1>
    %27 = vector.broadcast %26 : vector<1x8xi1> to vector<8x8xi1>
    %28 = vector.broadcast %cst_21 : f32 to vector<8x8xf32>
    %29 = arith.select %27, %25, %28 : vector<8x8xi1>, vector<8x8xf32>
    %cst_22 = arith.constant dense<0xFF800000> : vector<8xf32>
    %30 = vector.multi_reduction <maximumf>, %29, %cst_22 [1] : vector<8x8xf32> to vector<8xf32>
    %31 = vector.shape_cast %30 : vector<8xf32> to vector<8x1xf32>
    %32 = vector.broadcast %31 : vector<8x1xf32> to vector<8x8xf32>
    %33 = arith.subf %29, %32 : vector<8x8xf32>
    %34 = math.exp %33 : vector<8x8xf32>
    %cst_23 = arith.constant dense<0.000000e+00> : vector<8xf32>
    %35 = vector.multi_reduction <add>, %34, %cst_23 [1] : vector<8x8xf32> to vector<8xf32>
    %36 = vector.shape_cast %35 : vector<8xf32> to vector<8x1xf32>
    %37 = tpu.reciprocal %36 {approx = true} : vector<8x1xf32> -> vector<8x1xf32>
    %38 = vector.broadcast %37 : vector<8x1xf32> to vector<8x8xf32>
    %39 = arith.mulf %34, %38 : vector<8x8xf32>
    %40 = arith.truncf %39 : vector<8x8xf32> to vector<8x8xbf16>
    %c0_24 = arith.constant 0 : index
    %c0_25 = arith.constant 0 : index
    %41 = vector.load %arg18[%c0_24, %c0_25] : memref<8x32xbf16, #tpu.memory_space<vmem>>, vector<8x8xbf16>
    %cst_26 = arith.constant dense<0.000000e+00> : vector<8x8xf32>
    %42 = tpu.matmul %40, %41, %cst_26 {dimension_numbers = #tpu.dot_dimension_numbers<[1], [0], [0], [1], [0, 0, 1, 1], [], []>} : vector<8x8xbf16>, vector<8x8xbf16>, vector<8x8xf32> -> vector<8x8xf32>
    %43 = arith.truncf %42 : vector<8x8xf32> to vector<8x8xbf16>
    %c0_27 = arith.constant 0 : index
    %c0_28 = arith.constant 0 : index
    %44 = vector.load %arg19[%c0_27, %c0_28] : memref<8x32xbf16, #tpu.memory_space<vmem>>, vector<8x8xbf16>
    tpu.vector_store %arg19[%c0_27, %c0_28], %43 {strides = array<i32>} : memref<8x32xbf16, #tpu.memory_space<vmem>>, vector<8x8xbf16>,
    %c0_29 = arith.constant 0 : index
    %c8 = arith.constant 8 : index
    %45 = vector.load %arg16[%c0_29, %c8] : memref<8x32xbf16, #tpu.memory_space<vmem>>, vector<8x8xbf16>
    %c0_30 = arith.constant 0 : index
    %c8_31 = arith.constant 8 : index
    %46 = vector.load %arg17[%c0_30, %c8_31] : memref<8x32xbf16, #tpu.memory_space<vmem>>, vector<8x8xbf16>
    %cst_32 = arith.constant dense<0.000000e+00> : vector<8x8xf32>
    %47 = tpu.matmul %45, %46, %cst_32 {dimension_numbers = #tpu.dot_dimension_numbers<[1], [1], [0], [0], [0, 0, 1, 0], [], []>} : vector<8x8xbf16>, vector<8x8xbf16>, vector<8x8xf32> -> vector<8x8xf32>
    %cst_33 = arith.constant 0.353553385 : f32
    %48 = vector.broadcast %cst_33 : f32 to vector<8x8xf32>
    %49 = arith.mulf %47, %48 : vector<8x8xf32>
    %cst_34 = arith.constant -1.000000e+06 : f32
    %50 = vector.shape_cast %20 : vector<1x8xi1> to vector<1x8xi1>
    %51 = vector.broadcast %50 : vector<1x8xi1> to vector<8x8xi1>
    %52 = vector.broadcast %cst_34 : f32 to vector<8x8xf32>
    %53 = arith.select %51, %49, %52 : vector<8x8xi1>, vector<8x8xf32>
    %cst_35 = arith.constant dense<0xFF800000> : vector<8xf32>
    %54 = vector.multi_reduction <maximumf>, %53, %cst_35 [1] : vector<8x8xf32> to vector<8xf32>
    %55 = vector.shape_cast %54 : vector<8xf32> to vector<8x1xf32>
    %56 = vector.broadcast %55 : vector<8x1xf32> to vector<8x8xf32>
    %57 = arith.subf %53, %56 : vector<8x8xf32>
    %58 = math.exp %57 : vector<8x8xf32>
    %cst_36 = arith.constant dense<0.000000e+00> : vector<8xf32>
    %59 = vector.multi_reduction <add>, %58, %cst_36 [1] : vector<8x8xf32> to vector<8xf32>
    %60 = vector.shape_cast %59 : vector<8xf32> to vector<8x1xf32>
    %61 = tpu.reciprocal %60 {approx = true} : vector<8x1xf32> -> vector<8x1xf32>
    %62 = vector.broadcast %61 : vector<8x1xf32> to vector<8x8xf32>
    %63 = arith.mulf %58, %62 : vector<8x8xf32>
    %64 = arith.truncf %63 : vector<8x8xf32> to vector<8x8xbf16>
    %c0_37 = arith.constant 0 : index
    %c8_38 = arith.constant 8 : index
    %65 = vector.load %arg18[%c0_37, %c8_38] : memref<8x32xbf16, #tpu.memory_space<vmem>>, vector<8x8xbf16>
    %cst_39 = arith.constant dense<0.000000e+00> : vector<8x8xf32>
    %66 = tpu.matmul %64, %65, %cst_39 {dimension_numbers = #tpu.dot_dimension_numbers<[1], [0], [0], [1], [0, 0, 1, 1], [], []>} : vector<8x8xbf16>, vector<8x8xbf16>, vector<8x8xf32> -> vector<8x8xf32>
    %67 = arith.truncf %66 : vector<8x8xf32> to vector<8x8xbf16>
    %c0_40 = arith.constant 0 : index
    %c8_41 = arith.constant 8 : index
    %68 = vector.load %arg19[%c0_40, %c8_41] : memref<8x32xbf16, #tpu.memory_space<vmem>>, vector<8x8xbf16>
    tpu.vector_store %arg19[%c0_40, %c8_41], %67 {strides = array<i32>} : memref<8x32xbf16, #tpu.memory_space<vmem>>, vector<8x8xbf16>,
    %c0_42 = arith.constant 0 : index
    %c16 = arith.constant 16 : index
    %69 = vector.load %arg16[%c0_42, %c16] : memref<8x32xbf16, #tpu.memory_space<vmem>>, vector<8x8xbf16>
    %c0_43 = arith.constant 0 : index
    %c16_44 = arith.constant 16 : index
    %70 = vector.load %arg17[%c0_43, %c16_44] : memref<8x32xbf16, #tpu.memory_space<vmem>>, vector<8x8xbf16>
    %cst_45 = arith.constant dense<0.000000e+00> : vector<8x8xf32>
    %71 = tpu.matmul %69, %70, %cst_45 {dimension_numbers = #tpu.dot_dimension_numbers<[1], [1], [0], [0], [0, 0, 1, 0], [], []>} : vector<8x8xbf16>, vector<8x8xbf16>, vector<8x8xf32> -> vector<8x8xf32>
    %cst_46 = arith.constant 0.353553385 : f32
    %72 = vector.broadcast %cst_46 : f32 to vector<8x8xf32>
    %73 = arith.mulf %71, %72 : vector<8x8xf32>
    %cst_47 = arith.constant -1.000000e+06 : f32
    %74 = vector.shape_cast %20 : vector<1x8xi1> to vector<1x8xi1>
    %75 = vector.broadcast %74 : vector<1x8xi1> to vector<8x8xi1>
    %76 = vector.broadcast %cst_47 : f32 to vector<8x8xf32>
    %77 = arith.select %75, %73, %76 : vector<8x8xi1>, vector<8x8xf32>
    %cst_48 = arith.constant dense<0xFF800000> : vector<8xf32>
    %78 = vector.multi_reduction <maximumf>, %77, %cst_48 [1] : vector<8x8xf32> to vector<8xf32>
    %79 = vector.shape_cast %78 : vector<8xf32> to vector<8x1xf32>
    %80 = vector.broadcast %79 : vector<8x1xf32> to vector<8x8xf32>
    %81 = arith.subf %77, %80 : vector<8x8xf32>
    %82 = math.exp %81 : vector<8x8xf32>
    %cst_49 = arith.constant dense<0.000000e+00> : vector<8xf32>
    %83 = vector.multi_reduction <add>, %82, %cst_49 [1] : vector<8x8xf32> to vector<8xf32>
    %84 = vector.shape_cast %83 : vector<8xf32> to vector<8x1xf32>
    %85 = tpu.reciprocal %84 {approx = true} : vector<8x1xf32> -> vector<8x1xf32>
    %86 = vector.broadcast %85 : vector<8x1xf32> to vector<8x8xf32>
    %87 = arith.mulf %82, %86 : vector<8x8xf32>
    %88 = arith.truncf %87 : vector<8x8xf32> to vector<8x8xbf16>
    %c0_50 = arith.constant 0 : index
    %c16_51 = arith.constant 16 : index
    %89 = vector.load %arg18[%c0_50, %c16_51] : memref<8x32xbf16, #tpu.memory_space<vmem>>, vector<8x8xbf16>
    %cst_52 = arith.constant dense<0.000000e+00> : vector<8x8xf32>
    %90 = tpu.matmul %88, %89, %cst_52 {dimension_numbers = #tpu.dot_dimension_numbers<[1], [0], [0], [1], [0, 0, 1, 1], [], []>} : vector<8x8xbf16>, vector<8x8xbf16>, vector<8x8xf32> -> vector<8x8xf32>
    %91 = arith.truncf %90 : vector<8x8xf32> to vector<8x8xbf16>
    %c0_53 = arith.constant 0 : index
    %c16_54 = arith.constant 16 : index
    %92 = vector.load %arg19[%c0_53, %c16_54] : memref<8x32xbf16, #tpu.memory_space<vmem>>, vector<8x8xbf16>
    tpu.vector_store %arg19[%c0_53, %c16_54], %91 {strides = array<i32>} : memref<8x32xbf16, #tpu.memory_space<vmem>>, vector<8x8xbf16>,
    %c0_55 = arith.constant 0 : index
    %c24 = arith.constant 24 : index
    %93 = vector.load %arg16[%c0_55, %c24] : memref<8x32xbf16, #tpu.memory_space<vmem>>, vector<8x8xbf16>
    %c0_56 = arith.constant 0 : index
    %c24_57 = arith.constant 24 : index
    %94 = vector.load %arg17[%c0_56, %c24_57] : memref<8x32xbf16, #tpu.memory_space<vmem>>, vector<8x8xbf16>
    %cst_58 = arith.constant dense<0.000000e+00> : vector<8x8xf32>
    %95 = tpu.matmul %93, %94, %cst_58 {dimension_numbers = #tpu.dot_dimension_numbers<[1], [1], [0], [0], [0, 0, 1, 0], [], []>} : vector<8x8xbf16>, vector<8x8xbf16>, vector<8x8xf32> -> vector<8x8xf32>
    %cst_59 = arith.constant 0.353553385 : f32
    %96 = vector.broadcast %cst_59 : f32 to vector<8x8xf32>
    %97 = arith.mulf %95, %96 : vector<8x8xf32>
    %cst_60 = arith.constant -1.000000e+06 : f32
    %98 = vector.shape_cast %20 : vector<1x8xi1> to vector<1x8xi1>
    %99 = vector.broadcast %98 : vector<1x8xi1> to vector<8x8xi1>
    %100 = vector.broadcast %cst_60 : f32 to vector<8x8xf32>
    %101 = arith.select %99, %97, %100 : vector<8x8xi1>, vector<8x8xf32>
    %cst_61 = arith.constant dense<0xFF800000> : vector<8xf32>
    %102 = vector.multi_reduction <maximumf>, %101, %cst_61 [1] : vector<8x8xf32> to vector<8xf32>
    %103 = vector.shape_cast %102 : vector<8xf32> to vector<8x1xf32>
    %104 = vector.broadcast %103 : vector<8x1xf32> to vector<8x8xf32>
    %105 = arith.subf %101, %104 : vector<8x8xf32>
    %106 = math.exp %105 : vector<8x8xf32>
    %cst_62 = arith.constant dense<0.000000e+00> : vector<8xf32>
    %107 = vector.multi_reduction <add>, %106, %cst_62 [1] : vector<8x8xf32> to vector<8xf32>
    %108 = vector.shape_cast %107 : vector<8xf32> to vector<8x1xf32>
    %109 = tpu.reciprocal %108 {approx = true} : vector<8x1xf32> -> vector<8x1xf32>
    %110 = vector.broadcast %109 : vector<8x1xf32> to vector<8x8xf32>
    %111 = arith.mulf %106, %110 : vector<8x8xf32>
    %112 = arith.truncf %111 : vector<8x8xf32> to vector<8x8xbf16>
    %c0_63 = arith.constant 0 : index
    %c24_64 = arith.constant 24 : index
    %113 = vector.load %arg18[%c0_63, %c24_64] : memref<8x32xbf16, #tpu.memory_space<vmem>>, vector<8x8xbf16>
    %cst_65 = arith.constant dense<0.000000e+00> : vector<8x8xf32>
    %114 = tpu.matmul %112, %113, %cst_65 {dimension_numbers = #tpu.dot_dimension_numbers<[1], [0], [0], [1], [0, 0, 1, 1], [], []>} : vector<8x8xbf16>, vector<8x8xbf16>, vector<8x8xf32> -> vector<8x8xf32>
    %115 = arith.truncf %114 : vector<8x8xf32> to vector<8x8xbf16>
    %c0_66 = arith.constant 0 : index
    %c24_67 = arith.constant 24 : index
    %116 = vector.load %arg19[%c0_66, %c24_67] : memref<8x32xbf16, #tpu.memory_space<vmem>>, vector<8x8xbf16>
    tpu.vector_store %arg19[%c0_66, %c24_67], %115 {strides = array<i32>} : memref<8x32xbf16, #tpu.memory_space<vmem>>, vector<8x8xbf16>,
    %c0_68 = arith.constant 0 : index
    %c0_69 = arith.constant 0 : index
    %117 = vector.load %arg19[%c0_68, %c0_69] : memref<8x32xbf16, #tpu.memory_space<vmem>>, vector<8x32xbf16>
    %c0_70 = arith.constant 0 : index
    %c0_71 = arith.constant 0 : index
    %118 = vector.load %arg6[%c0_70, %c0_71] : memref<32x32xbf16, #tpu.memory_space<vmem>>, vector<32x32xbf16>
    %cst_72 = arith.constant dense<0.000000e+00> : vector<8x32xf32>
    %119 = tpu.matmul %117, %118, %cst_72 {dimension_numbers = #tpu.dot_dimension_numbers<[1], [0], [0], [1], [0, 0, 1, 1], [], []>} : vector<8x32xbf16>, vector<32x32xbf16>, vector<8x32xf32> -> vector<8x32xf32>
    %120 = arith.addf %119, %0 : vector<8x32xf32>
    %c0_73 = arith.constant 0 : index
    %c0_74 = arith.constant 0 : index
    %121 = vector.load %arg7[%c0_73, %c0_74] : memref<1x32xf32, #tpu.memory_space<vmem>>, vector<1x32xf32>
    %c0_75 = arith.constant 0 : index
    %c0_76 = arith.constant 0 : index
    %122 = vector.load %arg8[%c0_75, %c0_76] : memref<1x32xf32, #tpu.memory_space<vmem>>, vector<1x32xf32>
    %cst_77 = arith.constant dense<0.000000e+00> : vector<8xf32>
    %123 = vector.multi_reduction <add>, %120, %cst_77 [1] : vector<8x32xf32> to vector<8xf32>
    %124 = vector.shape_cast %123 : vector<8xf32> to vector<8x1xf32>
    %cst_78 = arith.constant 3.200000e+01 : f32
    %125 = vector.broadcast %cst_78 : f32 to vector<8x1xf32>
    %126 = arith.divf %124, %125 : vector<8x1xf32>
    %127 = vector.broadcast %126 : vector<8x1xf32> to vector<8x32xf32>
    %128 = arith.subf %120, %127 : vector<8x32xf32>
    %129 = arith.mulf %128, %128 : vector<8x32xf32>
    %cst_79 = arith.constant dense<0.000000e+00> : vector<8xf32>
    %130 = vector.multi_reduction <add>, %129, %cst_79 [1] : vector<8x32xf32> to vector<8xf32>
    %131 = vector.shape_cast %130 : vector<8xf32> to vector<8x1xf32>
    %cst_80 = arith.constant 3.200000e+01 : f32
    %132 = vector.broadcast %cst_80 : f32 to vector<8x1xf32>
    %133 = arith.divf %131, %132 : vector<8x1xf32>
    %134 = vector.broadcast %126 : vector<8x1xf32> to vector<8x32xf32>
    %135 = arith.subf %120, %134 : vector<8x32xf32>
    %cst_81 = arith.constant 9.99999974E-6 : f32
    %136 = vector.broadcast %cst_81 : f32 to vector<8x1xf32>
    %137 = arith.addf %133, %136 : vector<8x1xf32>
    %138 = math.rsqrt %137 : vector<8x1xf32>
    %139 = vector.broadcast %138 : vector<8x1xf32> to vector<8x32xf32>
    %140 = arith.mulf %135, %139 : vector<8x32xf32>
    %141 = vector.broadcast %121 : vector<1x32xf32> to vector<8x32xf32>
    %142 = arith.mulf %140, %141 : vector<8x32xf32>
    %143 = vector.broadcast %122 : vector<1x32xf32> to vector<8x32xf32>
    %144 = arith.addf %142, %143 : vector<8x32xf32>
    %145 = arith.truncf %144 : vector<8x32xf32> to vector<8x32xbf16>
    %c0_82 = arith.constant 0 : index
    %c0_83 = arith.constant 0 : index
    %146 = vector.load %arg9[%c0_82, %c0_83] : memref<32x64xbf16, #tpu.memory_space<vmem>>, vector<32x64xbf16>
    %cst_84 = arith.constant dense<0.000000e+00> : vector<8x64xf32>
    %147 = tpu.matmul %145, %146, %cst_84 {dimension_numbers = #tpu.dot_dimension_numbers<[1], [0], [0], [1], [0, 0, 1, 1], [], []>} : vector<8x32xbf16>, vector<32x64xbf16>, vector<8x64xf32> -> vector<8x64xf32>
    %c0_85 = arith.constant 0 : index
    %c0_86 = arith.constant 0 : index
    %148 = vector.load %arg10[%c0_85, %c0_86] : memref<1x64xf32, #tpu.memory_space<vmem>>, vector<1x64xf32>
    %149 = vector.broadcast %148 : vector<1x64xf32> to vector<8x64xf32>
    %150 = arith.addf %147, %149 : vector<8x64xf32>
    %cst_87 = arith.constant 0.000000e+00 : f32
    %151 = vector.broadcast %cst_87 : f32 to vector<8x64xf32>
    %152 = arith.maximumf %150, %151 : vector<8x64xf32>
    %153 = arith.truncf %152 : vector<8x64xf32> to vector<8x64xbf16>
    %c0_88 = arith.constant 0 : index
    %c0_89 = arith.constant 0 : index
    %154 = vector.load %arg11[%c0_88, %c0_89] : memref<64x32xbf16, #tpu.memory_space<vmem>>, vector<64x32xbf16>
    %cst_90 = arith.constant dense<0.000000e+00> : vector<8x32xf32>
    %155 = tpu.matmul %153, %154, %cst_90 {dimension_numbers = #tpu.dot_dimension_numbers<[1], [0], [0], [1], [0, 0, 1, 1], [], []>} : vector<8x64xbf16>, vector<64x32xbf16>, vector<8x32xf32> -> vector<8x32xf32>
    %c0_91 = arith.constant 0 : index
    %c0_92 = arith.constant 0 : index
    %156 = vector.load %arg12[%c0_91, %c0_92] : memref<1x32xf32, #tpu.memory_space<vmem>>, vector<1x32xf32>
    %157 = vector.broadcast %156 : vector<1x32xf32> to vector<8x32xf32>
    %158 = arith.addf %155, %157 : vector<8x32xf32>
    %159 = arith.addf %158, %144 : vector<8x32xf32>
    %c0_93 = arith.constant 0 : index
    %c0_94 = arith.constant 0 : index
    %160 = vector.load %arg13[%c0_93, %c0_94] : memref<1x32xf32, #tpu.memory_space<vmem>>, vector<1x32xf32>
    %c0_95 = arith.constant 0 : index
    %c0_96 = arith.constant 0 : index
    %161 = vector.load %arg14[%c0_95, %c0_96] : memref<1x32xf32, #tpu.memory_space<vmem>>, vector<1x32xf32>
    %cst_97 = arith.constant dense<0.000000e+00> : vector<8xf32>
    %162 = vector.multi_reduction <add>, %159, %cst_97 [1] : vector<8x32xf32> to vector<8xf32>
    %163 = vector.shape_cast %162 : vector<8xf32> to vector<8x1xf32>
    %cst_98 = arith.constant 3.200000e+01 : f32
    %164 = vector.broadcast %cst_98 : f32 to vector<8x1xf32>
    %165 = arith.divf %163, %164 : vector<8x1xf32>
    %166 = vector.broadcast %165 : vector<8x1xf32> to vector<8x32xf32>
    %167 = arith.subf %159, %166 : vector<8x32xf32>
    %168 = arith.mulf %167, %167 : vector<8x32xf32>
    %cst_99 = arith.constant dense<0.000000e+00> : vector<8xf32>
    %169 = vector.multi_reduction <add>, %168, %cst_99 [1] : vector<8x32xf32> to vector<8xf32>
    %170 = vector.shape_cast %169 : vector<8xf32> to vector<8x1xf32>
    %cst_100 = arith.constant 3.200000e+01 : f32
    %171 = vector.broadcast %cst_100 : f32 to vector<8x1xf32>
    %172 = arith.divf %170, %171 : vector<8x1xf32>
    %173 = vector.broadcast %165 : vector<8x1xf32> to vector<8x32xf32>
    %174 = arith.subf %159, %173 : vector<8x32xf32>
    %cst_101 = arith.constant 9.99999974E-6 : f32
    %175 = vector.broadcast %cst_101 : f32 to vector<8x1xf32>
    %176 = arith.addf %172, %175 : vector<8x1xf32>
    %177 = math.rsqrt %176 : vector<8x1xf32>
    %178 = vector.broadcast %177 : vector<8x1xf32> to vector<8x32xf32>
    %179 = arith.mulf %174, %178 : vector<8x32xf32>
    %180 = vector.broadcast %160 : vector<1x32xf32> to vector<8x32xf32>
    %181 = arith.mulf %179, %180 : vector<8x32xf32>
    %182 = vector.broadcast %161 : vector<1x32xf32> to vector<8x32xf32>
    %183 = arith.addf %181, %182 : vector<8x32xf32>
    %c0_102 = arith.constant 0 : index
    %c0_103 = arith.constant 0 : index
    %184 = vector.load %arg15[%c0_102, %c0_103] : memref<8x32xf32, #tpu.memory_space<vmem>>, vector<8x32xf32>
    tpu.vector_store %arg15[%c0_102, %c0_103], %183 {strides = array<i32>} : memref<8x32xf32, #tpu.memory_space<vmem>>, vector<8x32xf32>,
    return
  }
  func.func @transform_0(%arg0: i32, %arg1: memref<2xi32, #tpu.memory_space<smem>>) -> (i32, i32) {
    %c0_i32 = arith.constant 0 : i32
    %c0_i32_0 = arith.constant 0 : i32
    return %arg0, %c0_i32 : i32, i32
  }
  func.func @transform_1(%arg0: i32, %arg1: memref<2xi32, #tpu.memory_space<smem>>) -> (i32, i32) {
    %c0_i32 = arith.constant 0 : i32
    %c0_i32_0 = arith.constant 0 : i32
    %c0_i32_1 = arith.constant 0 : i32
    return %c0_i32, %c0_i32_0 : i32, i32
  }
  func.func @transform_2(%arg0: i32, %arg1: memref<2xi32, #tpu.memory_space<smem>>) -> (i32, i32) {
    %c0_i32 = arith.constant 0 : i32
    %c0_i32_0 = arith.constant 0 : i32
    %c0_i32_1 = arith.constant 0 : i32
    return %c0_i32, %c0_i32_0 : i32, i32
  }
  func.func @transform_3(%arg0: i32, %arg1: memref<2xi32, #tpu.memory_space<smem>>) -> (i32, i32) {
    %c0_i32 = arith.constant 0 : i32
    %c0_i32_0 = arith.constant 0 : i32
    %c0_i32_1 = arith.constant 0 : i32
    return %c0_i32, %c0_i32_0 : i32, i32
  }
  func.func @transform_4(%arg0: i32, %arg1: memref<2xi32, #tpu.memory_space<smem>>) -> (i32, i32) {
    %c0_i32 = arith.constant 0 : i32
    %c0_i32_0 = arith.constant 0 : i32
    %c0_i32_1 = arith.constant 0 : i32
    return %c0_i32, %c0_i32_0 : i32, i32
  }
  func.func @transform_5(%arg0: i32, %arg1: memref<2xi32, #tpu.memory_space<smem>>) -> (i32, i32) {
    %c0_i32 = arith.constant 0 : i32
    %c0_i32_0 = arith.constant 0 : i32
    %c0_i32_1 = arith.constant 0 : i32
    return %c0_i32, %c0_i32_0 : i32, i32
  }
  func.func @transform_6(%arg0: i32, %arg1: memref<2xi32, #tpu.memory_space<smem>>) -> (i32, i32) {
    %c0_i32 = arith.constant 0 : i32
    %c0_i32_0 = arith.constant 0 : i32
    %c0_i32_1 = arith.constant 0 : i32
    return %c0_i32, %c0_i32_0 : i32, i32
  }
  func.func @transform_7(%arg0: i32, %arg1: memref<2xi32, #tpu.memory_space<smem>>) -> (i32, i32) {
    %c0_i32 = arith.constant 0 : i32
    %c0_i32_0 = arith.constant 0 : i32
    %c0_i32_1 = arith.constant 0 : i32
    return %c0_i32, %c0_i32_0 : i32, i32
  }
  func.func @transform_8(%arg0: i32, %arg1: memref<2xi32, #tpu.memory_space<smem>>) -> (i32, i32) {
    %c0_i32 = arith.constant 0 : i32
    %c0_i32_0 = arith.constant 0 : i32
    %c0_i32_1 = arith.constant 0 : i32
    return %c0_i32, %c0_i32_0 : i32, i32
  }
  func.func @transform_9(%arg0: i32, %arg1: memref<2xi32, #tpu.memory_space<smem>>) -> (i32, i32) {
    %c0_i32 = arith.constant 0 : i32
    %c0_i32_0 = arith.constant 0 : i32
    %c0_i32_1 = arith.constant 0 : i32
    return %c0_i32, %c0_i32_0 : i32, i32
  }
  func.func @transform_10(%arg0: i32, %arg1: memref<2xi32, #tpu.memory_space<smem>>) -> (i32, i32) {
    %c0_i32 = arith.constant 0 : i32
    %c0_i32_0 = arith.constant 0 : i32
    %c0_i32_1 = arith.constant 0 : i32
    return %c0_i32, %c0_i32_0 : i32, i32
  }
  func.func @transform_11(%arg0: i32, %arg1: memref<2xi32, #tpu.memory_space<smem>>) -> (i32, i32) {
    %c0_i32 = arith.constant 0 : i32
    %c0_i32_0 = arith.constant 0 : i32
    %c0_i32_1 = arith.constant 0 : i32
    return %c0_i32, %c0_i32_0 : i32, i32
  }
  func.func @transform_12(%arg0: i32, %arg1: memref<2xi32, #tpu.memory_space<smem>>) -> (i32, i32) {
    %c0_i32 = arith.constant 0 : i32
    %c0_i32_0 = arith.constant 0 : i32
    %c0_i32_1 = arith.constant 0 : i32
    return %c0_i32, %c0_i32_0 : i32, i32
  }
  func.func @transform_13(%arg0: i32, %arg1: memref<2xi32, #tpu.memory_space<smem>>) -> (i32, i32) {
    %c0_i32 = arith.constant 0 : i32
    %c0_i32_0 = arith.constant 0 : i32
    return %arg0, %c0_i32 : i32, i32
  }
}

</mosaic_0001>

<llo_original>
// kernel: tpu_custom_call.1
$region0: #{tpu_custom_call.1}
  #allocation0 [shape = 'u32[]', space=smem, size = 0x4, offset = 0x4, fixed_abs, tag = 'smem constant byte address 0x4 - core index']
  #allocation1 [shape = 'u32[144,128]{1,0:T(1,128)}', space=vmem, size = 0x12000, scoped, tag = 'internal scratch']
  #allocation2 [shape = 'bf16[8,32]{1,0:T(8,128)(2,1)}', space=vmem, size = 0x800, scoped, tag = 'scratch operand']
  #allocation3 [shape = 'bf16[8,32]{1,0:T(8,128)(2,1)}', space=vmem, size = 0x800, scoped, tag = 'scratch operand']
  #allocation4 [shape = 'bf16[8,32]{1,0:T(8,128)(2,1)}', space=vmem, size = 0x800, scoped, tag = 'scratch operand']
  #allocation5 [shape = 'bf16[8,32]{1,0:T(8,128)(2,1)}', space=vmem, size = 0x800, scoped, tag = 'scratch operand']
  #allocation6 [shape = 's32[1]{0}', space=sflag, size = 0x4, scoped, tag = 'scoped memory for tpu_custom_call.1']
  #allocation7 [shape = 'u8[512]{0}', space=smem, size = 0x200, scoped, tag = 'prefetched SMEM operand 0']
  %s0 = inlined_call_operand.hbm [shape: s32[2], index: 0, kind: input, shape index: {}]
  %s1 = inlined_call_operand.vmem [shape: f32[16,32], index: 1, kind: input, shape index: {}]
  %s2 = inlined_call_operand.vmem [shape: bf16[32,32], index: 2, kind: input, shape index: {}]
  %s3 = inlined_call_operand.vmem [shape: bf16[32,32], index: 3, kind: input, shape index: {}]
  %s4 = inlined_call_operand.hbm [shape: bf16[32,32], index: 4, kind: input, shape index: {}]
  %s5 = inlined_call_operand.hbm [shape: bf16[32,32], index: 5, kind: input, shape index: {}]
  %s6 = inlined_call_operand.vmem [shape: f32[1,32], index: 6, kind: input, shape index: {}]
  %s7 = inlined_call_operand.vmem [shape: f32[1,32], index: 7, kind: input, shape index: {}]
  %s8 = inlined_call_operand.hbm [shape: bf16[32,64], index: 8, kind: input, shape index: {}]
  %s9 = inlined_call_operand.vmem [shape: f32[1,64], index: 9, kind: input, shape index: {}]
  %s10 = inlined_call_operand.vmem [shape: bf16[64,32], index: 10, kind: input, shape index: {}]
  %s11 = inlined_call_operand.vmem [shape: f32[1,32], index: 11, kind: input, shape index: {}]
  %s12 = inlined_call_operand.vmem [shape: f32[1,32], index: 12, kind: input, shape index: {}]
  %s13 = inlined_call_operand.vmem [shape: f32[1,32], index: 13, kind: input, shape index: {}]
  %s14 = inlined_call_operand.hbm [shape: f32[16,32], index: 14, kind: output, shape index: {}]
  %s15 = sld [smem:[#allocation0]]
  $region97: #{tpu_custom_call.1} parent=0
    _
  %s17 = ssub.s32 1, %s15
  %s18 = scalar_select 0, %s17, %s15
  %20 = dma.hbm_to_smem %s0, 16, [#allocation7], [#allocation6]
  %21 = dma.done [#allocation6], 16
  %22 = sfence
  $region1: #{tpu_custom_call.1} parent=0
    #allocation8 [shape = 'u8[8192]{0}', space=vmem, size = 0x2000, scoped, tag = 'input window, operand 4, single buffered']
    #allocation9 [shape = 's32[2]{0}', space=sflag, size = 0x8, scoped, tag = 'scoped memory for tpu_custom_call.1']
    #allocation10 [shape = 's32[2]{0}', space=sflag, size = 0x8, scoped, tag = 'scoped memory for tpu_custom_call.1']
    #allocation11 [shape = 'u8[8192]{0}', space=vmem, size = 0x2000, scoped, tag = 'input window, operand 5, single buffered']
    #allocation12 [shape = 's32[1]{0}', space=sflag, size = 0x4, scoped, tag = 'scoped memory for tpu_custom_call.1']
    #allocation13 [shape = 'u8[8192]{0}', space=vmem, size = 0x2000, scoped, tag = 'input window, operand 8, single buffered']
    #allocation14 [shape = 'u8[8192]{0}', space=vmem, size = 0x2000, scoped, tag = 'output window, operand 0']
    %23 = vsyncpa [#allocation9], 0
    %24 = vsyncpa [#allocation12], 0
    %25 = vsyncpa [#allocation10], 0
    %s26 = scalar_lea.sflag [#allocation10], 1
    %27 = vsyncpa %s26, 0
    loop: start=0, step=1, limit=4
    $region2: #{tpu_custom_call.1} parent=1 // loop_pre_header
      _
    $region3: #{tpu_custom_call.1} parent=1 // loop_header
      %s29 = sphi 0, %s33
      %p30 = scmp.ge.s32.totalorder %s29, 4
      %s39 = sphi 0, %s41
      %s42 = sphi 0, %s39
      %s43 = sphi 0, %s42
      %s59 = sphi 0, %s43
      %s63 = sphi 0, %s63
      %s65 = sphi 0, %s63
      %s66 = sphi 0, %s65
      %s80 = sphi 0, %s66
      %s84 = sphi 0, %s84
      %s86 = sphi 0, %s84
      %s87 = sphi 0, %s86
      %s101 = sphi 0, %s87
      %s105 = sphi 0, %s105
      %s107 = sphi 0, %s105
      %s108 = sphi 0, %s107
      %s122 = sphi 0, %s108
      %s126 = sphi 0, %s126
      %s128 = sphi 0, %s126
      %s129 = sphi 0, %s128
      %s143 = sphi 0, %s129
      %s147 = sphi 0, %s147
      %s149 = sphi 0, %s147
      %s150 = sphi 0, %s149
      %s164 = sphi 0, %s150
      %s168 = sphi 0, %s168
      %s170 = sphi 0, %s168
      %s171 = sphi 0, %s170
      %s185 = sphi 0, %s171
      %s189 = sphi 0, %s189
      %s191 = sphi 0, %s189
      %s192 = sphi 0, %s191
      %s206 = sphi 0, %s192
      %s210 = sphi 0, %s210
      %s212 = sphi 0, %s210
      %s213 = sphi 0, %s212
      %s227 = sphi 0, %s213
      %s231 = sphi 0, %s231
      %s233 = sphi 0, %s231
      %s234 = sphi 0, %s233
      %s248 = sphi 0, %s234
      %s252 = sphi 0, %s252
      %s254 = sphi 0, %s252
      %s255 = sphi 0, %s254
      %s269 = sphi 0, %s255
      %s273 = sphi 0, %s273
      %s275 = sphi 0, %s273
      %s276 = sphi 0, %s275
      %s290 = sphi 0, %s276
      %s294 = sphi 0, %s294
      %s296 = sphi 0, %s294
      %s297 = sphi 0, %s296
      %s311 = sphi 0, %s297
      %s317 = sphi 0, %s319
      %s320 = sphi 0, %s317
      %s321 = sphi 0, %s320
      %s337 = sphi 0, %s321
    $region4: #{tpu_custom_call.1} parent=1 // loop_header_branch
      %32 = sbr.rel (%p30) target = $region8
    $region5: #{tpu_custom_call.1} parent=1 // loop_body
      %s34 = ssub.s32 %s29, 1
      %s35 = ssub.s32 %s29, 2
      %s36 = sadd.s32 %s29, 1
      %s37 = ssub.s32 %s29, %s36
      %p38 = scmp.eq.s32.totalorder %s37, 0
      %s40 = sadd.s32 %s39, 1
      %s41 = scalar_select %p38, %s39, %s40
      %p44 = pneg %p38
      %p45 = scmp.eq.s32.totalorder %s29, 1
      %p46 = por %p44, %p45
      %p47 = scmp.ne.s32.totalorder %s39, %s42
      %p48 = scmp.eq.s32.totalorder %s29, 0
      %p49 = por %p47, %p48
      %p50 = scmp.ne.s32.totalorder %s39, %s42
      %p51 = scmp.eq.s32.totalorder %s34, 1
      %p52 = por %p50, %p51
      %p53 = scmp.ne.s32.totalorder %s42, %s43
      %p54 = scmp.eq.s32.totalorder %s34, 0
      %p55 = por %p53, %p54
      %p56 = scmp.ne.s32.totalorder %s42, %s43
      %p57 = scmp.eq.s32.totalorder %s35, 1
      %p58 = por %p56, %p57
      %p60 = scmp.ne.s32.totalorder %s43, %s59
      %p61 = scmp.eq.s32.totalorder %s35, 0
      %p62 = por %p60, %p61
      %s64 = sadd.s32 %s63, 1
      %p67 = scmp.eq.s32.totalorder %s29, 1
      %p68 = scmp.ne.s32.totalorder %s63, %s65
      %p69 = scmp.eq.s32.totalorder %s29, 0
      %p70 = por %p68, %p69
      %p71 = scmp.ne.s32.totalorder %s63, %s65
      %p72 = scmp.eq.s32.totalorder %s34, 1
      %p73 = por %p71, %p72
      %p74 = scmp.ne.s32.totalorder %s65, %s66
      %p75 = scmp.eq.s32.totalorder %s34, 0
      %p76 = por %p74, %p75
      %p77 = scmp.ne.s32.totalorder %s65, %s66
      %p78 = scmp.eq.s32.totalorder %s35, 1
      %p79 = por %p77, %p78
      %p81 = scmp.ne.s32.totalorder %s66, %s80
      %p82 = scmp.eq.s32.totalorder %s35, 0
      %p83 = por %p81, %p82
      %s85 = sadd.s32 %s84, 1
      %p88 = scmp.eq.s32.totalorder %s29, 1
      %p89 = scmp.ne.s32.totalorder %s84, %s86
      %p90 = scmp.eq.s32.totalorder %s29, 0
      %p91 = por %p89, %p90
      %p92 = scmp.ne.s32.totalorder %s84, %s86
      %p93 = scmp.eq.s32.totalorder %s34, 1
      %p94 = por %p92, %p93
      %p95 = scmp.ne.s32.totalorder %s86, %s87
      %p96 = scmp.eq.s32.totalorder %s34, 0
      %p97 = por %p95, %p96
      %p98 = scmp.ne.s32.totalorder %s86, %s87
      %p99 = scmp.eq.s32.totalorder %s35, 1
      %p100 = por %p98, %p99
      %p102 = scmp.ne.s32.totalorder %s87, %s101
      %p103 = scmp.eq.s32.totalorder %s35, 0
      %p104 = por %p102, %p103
      %s106 = sadd.s32 %s105, 1
      %p109 = scmp.eq.s32.totalorder %s29, 1
      %p110 = scmp.ne.s32.totalorder %s105, %s107
      %p111 = scmp.eq.s32.totalorder %s29, 0
      %p112 = por %p110, %p111
      %p113 = scmp.ne.s32.totalorder %s105, %s107
      %p114 = scmp.eq.s32.totalorder %s34, 1
      %p115 = por %p113, %p114
      %p116 = scmp.ne.s32.totalorder %s107, %s108
      %p117 = scmp.eq.s32.totalorder %s34, 0
      %p118 = por %p116, %p117
      %p119 = scmp.ne.s32.totalorder %s107, %s108
      %p120 = scmp.eq.s32.totalorder %s35, 1
      %p121 = por %p119, %p120
      %p123 = scmp.ne.s32.totalorder %s108, %s122
      %p124 = scmp.eq.s32.totalorder %s35, 0
      %p125 = por %p123, %p124
      %s127 = sadd.s32 %s126, 1
      %p130 = scmp.eq.s32.totalorder %s29, 1
      %p131 = scmp.ne.s32.totalorder %s126, %s128
      %p132 = scmp.eq.s32.totalorder %s29, 0
      %p133 = por %p131, %p132
      %p134 = scmp.ne.s32.totalorder %s126, %s128
      %p135 = scmp.eq.s32.totalorder %s34, 1
      %p136 = por %p134, %p135
      %p137 = scmp.ne.s32.totalorder %s128, %s129
      %p138 = scmp.eq.s32.totalorder %s34, 0
      %p139 = por %p137, %p138
      %p140 = scmp.ne.s32.totalorder %s128, %s129
      %p141 = scmp.eq.s32.totalorder %s35, 1
      %p142 = por %p140, %p141
      %p144 = scmp.ne.s32.totalorder %s129, %s143
      %p145 = scmp.eq.s32.totalorder %s35, 0
      %p146 = por %p144, %p145
      %s148 = sadd.s32 %s147, 1
      %p151 = scmp.eq.s32.totalorder %s29, 1
      %p152 = scmp.ne.s32.totalorder %s147, %s149
      %p153 = scmp.eq.s32.totalorder %s29, 0
      %p154 = por %p152, %p153
      %p155 = scmp.ne.s32.totalorder %s147, %s149
      %p156 = scmp.eq.s32.totalorder %s34, 1
      %p157 = por %p155, %p156
      %p158 = scmp.ne.s32.totalorder %s149, %s150
      %p159 = scmp.eq.s32.totalorder %s34, 0
      %p160 = por %p158, %p159
      %p161 = scmp.ne.s32.totalorder %s149, %s150
      %p162 = scmp.eq.s32.totalorder %s35, 1
      %p163 = por %p161, %p162
      %p165 = scmp.ne.s32.totalorder %s150, %s164
      %p166 = scmp.eq.s32.totalorder %s35, 0
      %p167 = por %p165, %p166
      %s169 = sadd.s32 %s168, 1
      %p172 = scmp.eq.s32.totalorder %s29, 1
      %p173 = scmp.ne.s32.totalorder %s168, %s170
      %p174 = scmp.eq.s32.totalorder %s29, 0
      %p175 = por %p173, %p174
      %p176 = scmp.ne.s32.totalorder %s168, %s170
      %p177 = scmp.eq.s32.totalorder %s34, 1
      %p178 = por %p176, %p177
      %p179 = scmp.ne.s32.totalorder %s170, %s171
      %p180 = scmp.eq.s32.totalorder %s34, 0
      %p181 = por %p179, %p180
      %p182 = scmp.ne.s32.totalorder %s170, %s171
      %p183 = scmp.eq.s32.totalorder %s35, 1
      %p184 = por %p182, %p183
      %p186 = scmp.ne.s32.totalorder %s171, %s185
      %p187 = scmp.eq.s32.totalorder %s35, 0
      %p188 = por %p186, %p187
      %s190 = sadd.s32 %s189, 1
      %p193 = scmp.eq.s32.totalorder %s29, 1
      %p194 = scmp.ne.s32.totalorder %s189, %s191
      %p195 = scmp.eq.s32.totalorder %s29, 0
      %p196 = por %p194, %p195
      %p197 = scmp.ne.s32.totalorder %s189, %s191
      %p198 = scmp.eq.s32.totalorder %s34, 1
      %p199 = por %p197, %p198
      %p200 = scmp.ne.s32.totalorder %s191, %s192
      %p201 = scmp.eq.s32.totalorder %s34, 0
      %p202 = por %p200, %p201
      %p203 = scmp.ne.s32.totalorder %s191, %s192
      %p204 = scmp.eq.s32.totalorder %s35, 1
      %p205 = por %p203, %p204
      %p207 = scmp.ne.s32.totalorder %s192, %s206
      %p208 = scmp.eq.s32.totalorder %s35, 0
      %p209 = por %p207, %p208
      %s211 = sadd.s32 %s210, 1
      %p214 = scmp.eq.s32.totalorder %s29, 1
      %p215 = scmp.ne.s32.totalorder %s210, %s212
      %p216 = scmp.eq.s32.totalorder %s29, 0
      %p217 = por %p215, %p216
      %p218 = scmp.ne.s32.totalorder %s210, %s212
      %p219 = scmp.eq.s32.totalorder %s34, 1
      %p220 = por %p218, %p219
      %p221 = scmp.ne.s32.totalorder %s212, %s213
      %p222 = scmp.eq.s32.totalorder %s34, 0
      %p223 = por %p221, %p222
      %p224 = scmp.ne.s32.totalorder %s212, %s213
      %p225 = scmp.eq.s32.totalorder %s35, 1
      %p226 = por %p224, %p225
      %p228 = scmp.ne.s32.totalorder %s213, %s227
      %p229 = scmp.eq.s32.totalorder %s35, 0
      %p230 = por %p228, %p229
      %s232 = sadd.s32 %s231, 1
      %p235 = scmp.eq.s32.totalorder %s29, 1
      %p236 = scmp.ne.s32.totalorder %s231, %s233
      %p237 = scmp.eq.s32.totalorder %s29, 0
      %p238 = por %p236, %p237
      %p239 = scmp.ne.s32.totalorder %s231, %s233
      %p240 = scmp.eq.s32.totalorder %s34, 1
      %p241 = por %p239, %p240
      %p242 = scmp.ne.s32.totalorder %s233, %s234
      %p243 = scmp.eq.s32.totalorder %s34, 0
      %p244 = por %p242, %p243
      %p245 = scmp.ne.s32.totalorder %s233, %s234
      %p246 = scmp.eq.s32.totalorder %s35, 1
      %p247 = por %p245, %p246
      %p249 = scmp.ne.s32.totalorder %s234, %s248
      %p250 = scmp.eq.s32.totalorder %s35, 0
      %p251 = por %p249, %p250
      %s253 = sadd.s32 %s252, 1
      %p256 = scmp.eq.s32.totalorder %s29, 1
      %p257 = scmp.ne.s32.totalorder %s252, %s254
      %p258 = scmp.eq.s32.totalorder %s29, 0
      %p259 = por %p257, %p258
      %p260 = scmp.ne.s32.totalorder %s252, %s254
      %p261 = scmp.eq.s32.totalorder %s34, 1
      %p262 = por %p260, %p261
      %p263 = scmp.ne.s32.totalorder %s254, %s255
      %p264 = scmp.eq.s32.totalorder %s34, 0
      %p265 = por %p263, %p264
      %p266 = scmp.ne.s32.totalorder %s254, %s255
      %p267 = scmp.eq.s32.totalorder %s35, 1
      %p268 = por %p266, %p267
      %p270 = scmp.ne.s32.totalorder %s255, %s269
      %p271 = scmp.eq.s32.totalorder %s35, 0
      %p272 = por %p270, %p271
      %s274 = sadd.s32 %s273, 1
      %p277 = scmp.eq.s32.totalorder %s29, 1
      %p278 = scmp.ne.s32.totalorder %s273, %s275
      %p279 = scmp.eq.s32.totalorder %s29, 0
      %p280 = por %p278, %p279
      %p281 = scmp.ne.s32.totalorder %s273, %s275
      %p282 = scmp.eq.s32.totalorder %s34, 1
      %p283 = por %p281, %p282
      %p284 = scmp.ne.s32.totalorder %s275, %s276
      %p285 = scmp.eq.s32.totalorder %s34, 0
      %p286 = por %p284, %p285
      %p287 = scmp.ne.s32.totalorder %s275, %s276
      %p288 = scmp.eq.s32.totalorder %s35, 1
      %p289 = por %p287, %p288
      %p291 = scmp.ne.s32.totalorder %s276, %s290
      %p292 = scmp.eq.s32.totalorder %s35, 0
      %p293 = por %p291, %p292
      %s295 = sadd.s32 %s294, 1
      %p298 = scmp.eq.s32.totalorder %s29, 1
      %p299 = scmp.ne.s32.totalorder %s294, %s296
      %p300 = scmp.eq.s32.totalorder %s29, 0
      %p301 = por %p299, %p300
      %p302 = scmp.ne.s32.totalorder %s294, %s296
      %p303 = scmp.eq.s32.totalorder %s34, 1
      %p304 = por %p302, %p303
      %p305 = scmp.ne.s32.totalorder %s296, %s297
      %p306 = scmp.eq.s32.totalorder %s34, 0
      %p307 = por %p305, %p306
      %p308 = scmp.ne.s32.totalorder %s296, %s297
      %p309 = scmp.eq.s32.totalorder %s35, 1
      %p310 = por %p308, %p309
      %p312 = scmp.ne.s32.totalorder %s297, %s311
      %p313 = scmp.eq.s32.totalorder %s35, 0
      %p314 = por %p312, %p313
      %s315 = ssub.s32 %s29, %s36
      %p316 = scmp.eq.s32.totalorder %s315, 0
      %s318 = sadd.s32 %s317, 1
      %s319 = scalar_select %p316, %s317, %s318
      %p322 = pneg %p316
      %p323 = scmp.eq.s32.totalorder %s29, 1
      %p324 = por %p322, %p323
      %p325 = scmp.ne.s32.totalorder %s317, %s320
      %p326 = scmp.eq.s32.totalorder %s29, 0
      %p327 = por %p325, %p326
      %p328 = scmp.ne.s32.totalorder %s317, %s320
      %p329 = scmp.eq.s32.totalorder %s34, 1
      %p330 = por %p328, %p329
      %p331 = scmp.ne.s32.totalorder %s320, %s321
      %p332 = scmp.eq.s32.totalorder %s34, 0
      %p333 = por %p331, %p332
      %p334 = scmp.ne.s32.totalorder %s320, %s321
      %p335 = scmp.eq.s32.totalorder %s35, 1
      %p336 = por %p334, %p335
      %p338 = scmp.ne.s32.totalorder %s321, %s337
      %p339 = scmp.eq.s32.totalorder %s35, 0
      %p340 = por %p338, %p339
      %p341 = scmp.le.s32.totalorder 1, %s29
      %p342 = scmp.lt.s32.totalorder %s29, 3
      %p343 = pnand %p341, %p342
      %p344 = pneg %p343
      // Predicated region
      $region9: #{tpu_custom_call.1} parent=5 // pred_check
        _
      $region10: #{tpu_custom_call.1} parent=5 // pred_check_branch
        %346 = sbr.rel (%p343) target = $region12
      $region11: #{tpu_custom_call.1} parent=5 // pred_region
        %s347 = ssub.s32 %s29, 1
        // Predicated region
        $region13: #{tpu_custom_call.1} parent=11 // pred_check
          %p348 = pneg %p76
        $region14: #{tpu_custom_call.1} parent=11 // pred_check_branch
          %350 = sbr.rel (%p348) target = $region16
        $region15: #{tpu_custom_call.1} parent=11 // pred_region
          _
        $region16: #{tpu_custom_call.1} parent=11 // pred_fallthru
          _
        // Predicated region
        $region17: #{tpu_custom_call.1} parent=11 // pred_check
          %p351 = pneg %p97
        $region18: #{tpu_custom_call.1} parent=11 // pred_check_branch
          %353 = sbr.rel (%p351) target = $region20
        $region19: #{tpu_custom_call.1} parent=11 // pred_region
          _
        $region20: #{tpu_custom_call.1} parent=11 // pred_fallthru
          _
        // Predicated region
        $region21: #{tpu_custom_call.1} parent=11 // pred_check
          %p354 = pneg %p118
        $region22: #{tpu_custom_call.1} parent=11 // pred_check_branch
          %356 = sbr.rel (%p354) target = $region24
        $region23: #{tpu_custom_call.1} parent=11 // pred_region
          %s358 = ssub.s32 256, 256
          %359 = vsyncadd [#allocation9], %s358
          %s360 = sshll.u32 [#allocation8], 4
          %s361 = int_to_ptr.vmem [resolvable:$true] %s360
          %366 = dma.hbm_to_vmem [thread:$0]  %s4, 256, %s361, [#allocation9], 64, 64, 4
        $region24: #{tpu_custom_call.1} parent=11 // pred_fallthru
          _
        // Predicated region
        $region25: #{tpu_custom_call.1} parent=11 // pred_check
          %p367 = pneg %p139
        $region26: #{tpu_custom_call.1} parent=11 // pred_check_branch
          %369 = sbr.rel (%p367) target = $region28
        $region27: #{tpu_custom_call.1} parent=11 // pred_region
          %s371 = ssub.s32 256, 256
          %372 = vsyncadd [#allocation12], %s371
          %s373 = sshll.u32 [#allocation11], 4
          %s374 = int_to_ptr.vmem [resolvable:$true] %s373
          %379 = dma.hbm_to_vmem [thread:$0]  %s5, 256, %s374, [#allocation12], 64, 64, 4
        $region28: #{tpu_custom_call.1} parent=11 // pred_fallthru
          _
        // Predicated region
        $region29: #{tpu_custom_call.1} parent=11 // pred_check
          %p380 = pneg %p160
        $region30: #{tpu_custom_call.1} parent=11 // pred_check_branch
          %382 = sbr.rel (%p380) target = $region32
        $region31: #{tpu_custom_call.1} parent=11 // pred_region
          _
        $region32: #{tpu_custom_call.1} parent=11 // pred_fallthru
          _
        // Predicated region
        $region33: #{tpu_custom_call.1} parent=11 // pred_check
          %p383 = pneg %p181
        $region34: #{tpu_custom_call.1} parent=11 // pred_check_branch
          %385 = sbr.rel (%p383) target = $region36
        $region35: #{tpu_custom_call.1} parent=11 // pred_region
          _
        $region36: #{tpu_custom_call.1} parent=11 // pred_fallthru
          _
        // Predicated region
        $region37: #{tpu_custom_call.1} parent=11 // pred_check
          %p386 = pneg %p202
        $region38: #{tpu_custom_call.1} parent=11 // pred_check_branch
          %388 = sbr.rel (%p386) target = $region40
        $region39: #{tpu_custom_call.1} parent=11 // pred_region
          %s390 = ssub.s32 256, 256
          %391 = vsyncadd [#allocation12], %s390
          %s392 = sshll.u32 [#allocation13], 4
          %s393 = int_to_ptr.vmem [resolvable:$true] %s392
          %398 = dma.hbm_to_vmem [thread:$0]  %s8, 256, %s393, [#allocation12], 64, 64, 4
        $region40: #{tpu_custom_call.1} parent=11 // pred_fallthru
          _
        // Predicated region
        $region41: #{tpu_custom_call.1} parent=11 // pred_check
          %p399 = pneg %p223
        $region42: #{tpu_custom_call.1} parent=11 // pred_check_branch
          %401 = sbr.rel (%p399) target = $region44
        $region43: #{tpu_custom_call.1} parent=11 // pred_region
          _
        $region44: #{tpu_custom_call.1} parent=11 // pred_fallthru
          _
        // Predicated region
        $region45: #{tpu_custom_call.1} parent=11 // pred_check
          %p402 = pneg %p244
        $region46: #{tpu_custom_call.1} parent=11 // pred_check_branch
          %404 = sbr.rel (%p402) target = $region48
        $region47: #{tpu_custom_call.1} parent=11 // pred_region
          _
        $region48: #{tpu_custom_call.1} parent=11 // pred_fallthru
          _
        // Predicated region
        $region49: #{tpu_custom_call.1} parent=11 // pred_check
          %p405 = pneg %p265
        $region50: #{tpu_custom_call.1} parent=11 // pred_check_branch
          %407 = sbr.rel (%p405) target = $region52
        $region51: #{tpu_custom_call.1} parent=11 // pred_region
          _
        $region52: #{tpu_custom_call.1} parent=11 // pred_fallthru
          _
        // Predicated region
        $region53: #{tpu_custom_call.1} parent=11 // pred_check
          %p408 = pneg %p286
        $region54: #{tpu_custom_call.1} parent=11 // pred_check_branch
          %410 = sbr.rel (%p408) target = $region56
        $region55: #{tpu_custom_call.1} parent=11 // pred_region
          _
        $region56: #{tpu_custom_call.1} parent=11 // pred_fallthru
          _
        // Predicated region
        $region57: #{tpu_custom_call.1} parent=11 // pred_check
          %p411 = pneg %p307
        $region58: #{tpu_custom_call.1} parent=11 // pred_check_branch
          %413 = sbr.rel (%p411) target = $region60
        $region59: #{tpu_custom_call.1} parent=11 // pred_region
          _
        $region60: #{tpu_custom_call.1} parent=11 // pred_fallthru
          _
      $region12: #{tpu_custom_call.1} parent=5 // pred_fallthru
        _
      %p414 = scmp.lt.s32.totalorder %s29, 2
      // Predicated region
      $region61: #{tpu_custom_call.1} parent=5 // pred_check
        %p415 = pneg %p414
      $region62: #{tpu_custom_call.1} parent=5 // pred_check_branch
        %417 = sbr.rel (%p415) target = $region64
      $region63: #{tpu_custom_call.1} parent=5 // pred_region
        // Predicated region
        $region65: #{tpu_custom_call.1} parent=63 // pred_check
          %p418 = pneg %p49
        $region66: #{tpu_custom_call.1} parent=63 // pred_check_branch
          %420 = sbr.rel (%p418) target = $region68
        $region67: #{tpu_custom_call.1} parent=63 // pred_region
          %p421 = scmp.lt.s32.totalorder %s29, 1
          %s422 = scalar_select %p421, %s29, 1
          %s423 = smul.addr %s422, 8
          %s424 = scalar_lea.vmem %s1, %s423
        $region68: #{tpu_custom_call.1} parent=63 // pred_fallthru
          _
      $region64: #{tpu_custom_call.1} parent=5 // pred_fallthru
        _
      %p425 = scmp.le.s32.totalorder 1, %s29
      %p426 = scmp.lt.s32.totalorder %s29, 3
      %p427 = pnand %p425, %p426
      %p428 = pneg %p427
      // Predicated region
      $region69: #{tpu_custom_call.1} parent=5 // pred_check
        _
      $region70: #{tpu_custom_call.1} parent=5 // pred_check_branch
        %430 = sbr.rel (%p427) target = $region72
      $region71: #{tpu_custom_call.1} parent=5 // pred_region
        %s431 = ssub.s32 %s29, 1
        // Predicated region
        $region73: #{tpu_custom_call.1} parent=71 // pred_check
          %p432 = pneg %p118
        $region74: #{tpu_custom_call.1} parent=71 // pred_check_branch
          %434 = sbr.rel (%p432) target = $region76
        $region75: #{tpu_custom_call.1} parent=71 // pred_region
          %435 = dma.done [#allocation9], 256
        $region76: #{tpu_custom_call.1} parent=71 // pred_fallthru
          _
        // Predicated region
        $region77: #{tpu_custom_call.1} parent=71 // pred_check
          %p436 = pneg %p139
        $region78: #{tpu_custom_call.1} parent=71 // pred_check_branch
          %438 = sbr.rel (%p436) target = $region80
        $region79: #{tpu_custom_call.1} parent=71 // pred_region
          %439 = dma.done [#allocation12], 256
        $region80: #{tpu_custom_call.1} parent=71 // pred_fallthru
          _
        // Predicated region
        $region81: #{tpu_custom_call.1} parent=71 // pred_check
          %p440 = pneg %p202
        $region82: #{tpu_custom_call.1} parent=71 // pred_check_branch
          %442 = sbr.rel (%p440) target = $region84
        $region83: #{tpu_custom_call.1} parent=71 // pred_region
          %443 = dma.done [#allocation12], 256
        $region84: #{tpu_custom_call.1} parent=71 // pred_fallthru
          _
        %p444 = scmp.lt.s32.totalorder %s34, 1
        %s445 = scalar_select %p444, %s34, 1
        %s446 = smul.addr %s445, 8
        %s447 = scalar_lea.vmem %s1, %s446
        %p448 = pneg %p55
        %p449 = pneg %p52
        %p450 = pneg %p76
        %p451 = pneg %p73
        %p452 = pneg %p97
        %p453 = pneg %p94
        %p454 = pneg %p118
        %p455 = pneg %p115
        %p456 = pneg %p139
        %p457 = pneg %p136
        %p458 = pneg %p160
        %p459 = pneg %p157
        %p460 = pneg %p181
        %p461 = pneg %p178
        %p462 = pneg %p202
        %p463 = pneg %p199
        %p464 = pneg %p223
        %p465 = pneg %p220
        %p466 = pneg %p244
        %p467 = pneg %p241
        %p468 = pneg %p265
        %p469 = pneg %p262
        %p470 = pneg %p286
        %p471 = pneg %p283
        %p472 = pneg %p307
        %p473 = pneg %p304
        %p474 = pneg %p333
        %p475 = pneg %p330
        %s476 = sand.u32 %s320, 1
        %s477 = scalar_lea.sflag [#allocation10], %s476
        %s478 = sand.u32 %s320, 1
        %s479 = smul.addr %s478, 8
        %s480 = scalar_lea.vmem [#allocation14], %s479
        %p481 = scmp.lt.s32.totalorder %s34, 1
        %s482 = scalar_select %p481, %s34, 1
        %s483 = smul.addr %s482, 8
        %s484 = scalar_lea.vmem %s1, %s483
        %v486 = vld [vmem:[%s484] sm:$0xff]
        %v487 = vpack.c.bf16 %v486, %v486
        %v488 = vld [vmem:[%s2] sm:$0xf]
        %v489 = vld [vmem:[%s2 + $0x4] sm:$0xf]
        %v490 = vld [vmem:[%s2 + $0x8] sm:$0xf]
        %v491 = vld [vmem:[%s2 + $0xc] sm:$0xf]
        %v496 = vunpack.c.l.b16 %v488
        %v497 = vunpack.c.l.b16 %v489
        %v498 = vunpack.c.l.b16 %v490
        %v499 = vunpack.c.l.b16 %v491
        %v500 = vpack.c.b16 %v497, %v496
        %v501 = vpack.c.b16 %v499, %v498
        %vm504 = vcmask 261120
        %v506 = vsel %vm504, %v487, 0
        %508 = vmatprep.subr.bf16.mxu0 0
        %509 = vmatpush1.bf16.msra.mxu0 %v500
        %510 = vmatprep.subr.bf16.mxu0 0
        %511 = vmatpush1.bf16.msra.mxu0 %v501
        %512 = vmatprep.subr.bf16.mxu0 0
        %513 = vmatpush1.bf16.msra.mxu0 0
        %514 = vmatprep.subr.bf16.mxu0 0
        %515 = vmatpush1.bf16.msra.mxu0 0
        %516 = vmatprep.subr.bf16.mxu0 0
        %517 = vmatpush1.bf16.msra.mxu0 0
        %518 = vmatprep.subr.bf16.mxu0 0
        %519 = vmatpush1.bf16.msra.mxu0 0
        %520 = vmatprep.subr.bf16.mxu0 0
        %521 = vmatpush1.bf16.msra.mxu0 0
        %522 = vmatprep.subr.bf16.mxu0 0
        %523 = vmatpush1.bf16.msra.mxu0 0
        %524 = vmatprep.subr.bf16.mxu0 0
        %525 = vmatpush1.bf16.msra.mxu0 0
        %526 = vmatprep.subr.bf16.mxu0 0
        %527 = vmatpush1.bf16.msra.mxu0 0
        %528 = vmatprep.subr.bf16.mxu0 0
        %529 = vmatpush1.bf16.msra.mxu0 0
        %530 = vmatprep.subr.bf16.mxu0 0
        %531 = vmatpush1.bf16.msra.mxu0 0
        %532 = vmatprep.subr.bf16.mxu0 0
        %533 = vmatpush1.bf16.msra.mxu0 0
        %534 = vmatprep.subr.bf16.mxu0 0
        %535 = vmatpush1.bf16.msra.mxu0 0
        %536 = vmatprep.subr.bf16.mxu0 0
        %537 = vmatpush1.bf16.msra.mxu0 0
        %538 = vmatprep.subr.bf16.mxu0 0
        %539 = vmatpush1.bf16.msra.mxu0 0
        %540 = vmatprep.mubr.bf16.mxu0 0
        %541 = vmatmul.mubr.bf16.gmra.mrb[0].mxu0 %v506
        %v542 = vpop.f32.mrb[0].mxu0
        %v543 = vadd.f32 0.0, %v542
        %v544 = vpop.f32.mrb[0].mxu0
        %v545 = vpop.f32.mrb[0].mxu0
        %v546 = vpop.f32.mrb[0].mxu0
        %547 = vdwg.mxu0
        %v548 = vpack.c.bf16 %v543, %v543
        %vm549 = vcmask 257024
        %550 = vst.msk [vmem:[#allocation2] sm:$0xf] %vm549, %v548
        %v551 = vld [vmem:[%s3] sm:$0xf]
        %v552 = vld [vmem:[%s3 + $0x4] sm:$0xf]
        %v553 = vld [vmem:[%s3 + $0x8] sm:$0xf]
        %v554 = vld [vmem:[%s3 + $0xc] sm:$0xf]
        %v559 = vunpack.c.l.b16 %v551
        %v560 = vunpack.c.l.b16 %v552
        %v561 = vunpack.c.l.b16 %v553
        %v562 = vunpack.c.l.b16 %v554
        %v563 = vpack.c.b16 %v560, %v559
        %v564 = vpack.c.b16 %v562, %v561
        %567 = vmatprep.subr.bf16.mxu0 0
        %568 = vmatpush1.bf16.msra.mxu0 %v563
        %569 = vmatprep.subr.bf16.mxu0 0
        %570 = vmatpush1.bf16.msra.mxu0 %v564
        %571 = vmatprep.subr.bf16.mxu0 0
        %572 = vmatpush1.bf16.msra.mxu0 0
        %573 = vmatprep.subr.bf16.mxu0 0
        %574 = vmatpush1.bf16.msra.mxu0 0
        %575 = vmatprep.subr.bf16.mxu0 0
        %576 = vmatpush1.bf16.msra.mxu0 0
        %577 = vmatprep.subr.bf16.mxu0 0
        %578 = vmatpush1.bf16.msra.mxu0 0
        %579 = vmatprep.subr.bf16.mxu0 0
        %580 = vmatpush1.bf16.msra.mxu0 0
        %581 = vmatprep.subr.bf16.mxu0 0
        %582 = vmatpush1.bf16.msra.mxu0 0
        %583 = vmatprep.subr.bf16.mxu0 0
        %584 = vmatpush1.bf16.msra.mxu0 0
        %585 = vmatprep.subr.bf16.mxu0 0
        %586 = vmatpush1.bf16.msra.mxu0 0
        %587 = vmatprep.subr.bf16.mxu0 0
        %588 = vmatpush1.bf16.msra.mxu0 0
        %589 = vmatprep.subr.bf16.mxu0 0
        %590 = vmatpush1.bf16.msra.mxu0 0
        %591 = vmatprep.subr.bf16.mxu0 0
        %592 = vmatpush1.bf16.msra.mxu0 0
        %593 = vmatprep.subr.bf16.mxu0 0
        %594 = vmatpush1.bf16.msra.mxu0 0
        %595 = vmatprep.subr.bf16.mxu0 0
        %596 = vmatpush1.bf16.msra.mxu0 0
        %597 = vmatprep.subr.bf16.mxu0 0
        %598 = vmatpush1.bf16.msra.mxu0 0
        %599 = vmatprep.mubr.bf16.mxu0 0
        %600 = vmatmul.mubr.bf16.gmra.mrb[0].mxu0 %v506
        %v601 = vpop.f32.mrb[0].mxu0
        %v602 = vadd.f32 0.0, %v601
        %v603 = vpop.f32.mrb[0].mxu0
        %v604 = vpop.f32.mrb[0].mxu0
        %v605 = vpop.f32.mrb[0].mxu0
        %606 = vdwg.mxu0
        %v607 = vpack.c.bf16 %v602, %v602
        %608 = vst.msk [vmem:[#allocation3] sm:$0xf] %vm549, %v607
        %v609 = vld [vmem:[#allocation8] sm:$0xf]
        %v610 = vld [vmem:[#allocation8 + $0x4] sm:$0xf]
        %v611 = vld [vmem:[#allocation8 + $0x8] sm:$0xf]
        %v612 = vld [vmem:[#allocation8 + $0xc] sm:$0xf]
        %v617 = vunpack.c.l.b16 %v609
        %v618 = vunpack.c.l.b16 %v610
        %v619 = vunpack.c.l.b16 %v611
        %v620 = vunpack.c.l.b16 %v612
        %v621 = vpack.c.b16 %v618, %v617
        %v622 = vpack.c.b16 %v620, %v619
        %625 = vmatprep.subr.bf16.mxu0 0
        %626 = vmatpush1.bf16.msra.mxu0 %v621
        %627 = vmatprep.subr.bf16.mxu0 0
        %628 = vmatpush1.bf16.msra.mxu0 %v622
        %629 = vmatprep.subr.bf16.mxu0 0
        %630 = vmatpush1.bf16.msra.mxu0 0
        %631 = vmatprep.subr.bf16.mxu0 0
        %632 = vmatpush1.bf16.msra.mxu0 0
        %633 = vmatprep.subr.bf16.mxu0 0
        %634 = vmatpush1.bf16.msra.mxu0 0
        %635 = vmatprep.subr.bf16.mxu0 0
        %636 = vmatpush1.bf16.msra.mxu0 0
        %637 = vmatprep.subr.bf16.mxu0 0
        %638 = vmatpush1.bf16.msra.mxu0 0
        %639 = vmatprep.subr.bf16.mxu0 0
        %640 = vmatpush1.bf16.msra.mxu0 0
        %641 = vmatprep.subr.bf16.mxu0 0
        %642 = vmatpush1.bf16.msra.mxu0 0
        %643 = vmatprep.subr.bf16.mxu0 0
        %644 = vmatpush1.bf16.msra.mxu0 0
        %645 = vmatprep.subr.bf16.mxu0 0
        %646 = vmatpush1.bf16.msra.mxu0 0
        %647 = vmatprep.subr.bf16.mxu0 0
        %648 = vmatpush1.bf16.msra.mxu0 0
        %649 = vmatprep.subr.bf16.mxu0 0
        %650 = vmatpush1.bf16.msra.mxu0 0
        %651 = vmatprep.subr.bf16.mxu0 0
        %652 = vmatpush1.bf16.msra.mxu0 0
        %653 = vmatprep.subr.bf16.mxu0 0
        %654 = vmatpush1.bf16.msra.mxu0 0
        %655 = vmatprep.subr.bf16.mxu0 0
        %656 = vmatpush1.bf16.msra.mxu0 0
        %657 = vmatprep.mubr.bf16.mxu0 0
        %658 = vmatmul.mubr.bf16.gmra.mrb[0].mxu0 %v506
        %v659 = vpop.f32.mrb[0].mxu0
        %v660 = vadd.f32 0.0, %v659
        %v661 = vpop.f32.mrb[0].mxu0
        %v662 = vpop.f32.mrb[0].mxu0
        %v663 = vpop.f32.mrb[0].mxu0
        %664 = vdwg.mxu0
        %v665 = vpack.c.bf16 %v660, %v660
        %666 = vst.msk [vmem:[#allocation4] sm:$0xf] %vm549, %v665
        %v667 = vlaneseq
        %v668 = vand.u32 %v667, 127
        %s669 = sld [smem:[#allocation7 + %s34]]
        %v670 = vstv %s669
        %vm671 = vcmp.lt.s32.totalorder %v668, %v670
        %v672 = vld [vmem:[#allocation2] sm:$0xf]
        %v673 = vld [vmem:[#allocation3] sm:$0xf]
        %vm674 = vcmask 64512
        %v676 = vsel %vm674, %v672, 0
        %v679 = vsel %vm674, %v673, 0
        %681 = vmatprep.subr.bf16.mxu0 0
        %682 = vmatpush1.bf16.xpose.msra.mxu0 %v679
        %683 = vmatprep.subr.bf16.mxu0 0
        %684 = vmatpush1.bf16.xpose.msra.mxu0 0
        %685 = vmatprep.subr.bf16.mxu0 0
        %686 = vmatpush1.bf16.xpose.msra.mxu0 0
        %687 = vmatprep.subr.bf16.mxu0 0
        %688 = vmatpush1.bf16.xpose.msra.mxu0 0
        %689 = vmatprep.subr.bf16.mxu0 0
        %690 = vmatpush1.bf16.xpose.msra.mxu0 0
        %691 = vmatprep.subr.bf16.mxu0 0
        %692 = vmatpush1.bf16.xpose.msra.mxu0 0
        %693 = vmatprep.subr.bf16.mxu0 0
        %694 = vmatpush1.bf16.xpose.msra.mxu0 0
        %695 = vmatprep.subr.bf16.mxu0 0
        %696 = vmatpush1.bf16.xpose.msra.mxu0 0
        %697 = vmatprep.subr.bf16.mxu0 0
        %698 = vmatpush1.bf16.xpose.msra.mxu0 0
        %699 = vmatprep.subr.bf16.mxu0 0
        %700 = vmatpush1.bf16.xpose.msra.mxu0 0
        %701 = vmatprep.subr.bf16.mxu0 0
        %702 = vmatpush1.bf16.xpose.msra.mxu0 0
        %703 = vmatprep.subr.bf16.mxu0 0
        %704 = vmatpush1.bf16.xpose.msra.mxu0 0
        %705 = vmatprep.subr.bf16.mxu0 0
        %706 = vmatpush1.bf16.xpose.msra.mxu0 0
        %707 = vmatprep.subr.bf16.mxu0 0
        %708 = vmatpush1.bf16.xpose.msra.mxu0 0
        %709 = vmatprep.subr.bf16.mxu0 0
        %710 = vmatpush1.bf16.xpose.msra.mxu0 0
        %711 = vmatprep.subr.bf16.mxu0 0
        %712 = vmatpush1.bf16.xpose.msra.mxu0 0
        %713 = vmatprep.mubr.bf16.mxu0 0
        %714 = vmatmul.mubr.bf16.gmra.mrb[0].mxu0 %v676
        %v715 = vpop.f32.mrb[0].mxu0
        %v716 = vadd.f32 0.0, %v715
        %v717 = vpop.f32.mrb[0].mxu0
        %v718 = vpop.f32.mrb[0].mxu0
        %v719 = vpop.f32.mrb[0].mxu0
        %720 = vdwg.mxu0
        %v721 = vmul.f32 %v716, 0.35355338
        %v722 = vsel %vm671, 1, 0
        %vm723 = vcmp.eq.s32.totalorder %v722, 1
        %v724 = vsel %vm723, %v721, -1000000.0
        %v725 = vsel %vm674, %v724, -inf
        %726 = vmax.xlane.f32.xlu0 %v725
        %v727 = vpop.xlane.xlu0 %726
        %v728 = vsub.f32 %v724, %v727
        %v729 = vmul.f32 %v728, 1.442695
        %v730 = vpow.pop %v729
        %v731 = vsel %vm674, %v730, 0.0
        %732 = vadd.xlane.f32.xlu0 %v731
        %v733 = vpop.xlane.xlu0 %732
        %v734 = vrcp.pop %v733
        %v735 = vmul.f32 %v730, %v734
        %v736 = vpack.c.bf16 %v735, %v735
        %v737 = vld [vmem:[#allocation4] sm:$0xf]
        %v739 = vsel %vm674, %v736, 0
        %vm741 = vcmask 1043456
        %v743 = vsel %vm741, %v737, 0
        %745 = vmatprep.subr.bf16.mxu0 0
        %746 = vmatpush1.bf16.msra.mxu0 %v743
        %747 = vmatprep.subr.bf16.mxu0 0
        %748 = vmatpush1.bf16.msra.mxu0 0
        %749 = vmatprep.subr.bf16.mxu0 0
        %750 = vmatpush1.bf16.msra.mxu0 0
        %751 = vmatprep.subr.bf16.mxu0 0
        %752 = vmatpush1.bf16.msra.mxu0 0
        %753 = vmatprep.subr.bf16.mxu0 0
        %754 = vmatpush1.bf16.msra.mxu0 0
        %755 = vmatprep.subr.bf16.mxu0 0
        %756 = vmatpush1.bf16.msra.mxu0 0
        %757 = vmatprep.subr.bf16.mxu0 0
        %758 = vmatpush1.bf16.msra.mxu0 0
        %759 = vmatprep.subr.bf16.mxu0 0
        %760 = vmatpush1.bf16.msra.mxu0 0
        %761 = vmatprep.subr.bf16.mxu0 0
        %762 = vmatpush1.bf16.msra.mxu0 0
        %763 = vmatprep.subr.bf16.mxu0 0
        %764 = vmatpush1.bf16.msra.mxu0 0
        %765 = vmatprep.subr.bf16.mxu0 0
        %766 = vmatpush1.bf16.msra.mxu0 0
        %767 = vmatprep.subr.bf16.mxu0 0
        %768 = vmatpush1.bf16.msra.mxu0 0
        %769 = vmatprep.subr.bf16.mxu0 0
        %770 = vmatpush1.bf16.msra.mxu0 0
        %771 = vmatprep.subr.bf16.mxu0 0
        %772 = vmatpush1.bf16.msra.mxu0 0
        %773 = vmatprep.subr.bf16.mxu0 0
        %774 = vmatpush1.bf16.msra.mxu0 0
        %775 = vmatprep.subr.bf16.mxu0 0
        %776 = vmatpush1.bf16.msra.mxu0 0
        %777 = vmatprep.mubr.bf16.mxu0 0
        %778 = vmatmul.mubr.bf16.gmra.mrb[0].mxu0 %v739
        %v779 = vpop.f32.mrb[0].mxu0
        %v780 = vadd.f32 0.0, %v779
        %v781 = vpop.f32.mrb[0].mxu0
        %v782 = vpop.f32.mrb[0].mxu0
        %v783 = vpop.f32.mrb[0].mxu0
        %784 = vdwg.mxu0
        %v785 = vpack.c.bf16 %v780, %v780
        %vm786 = vcmask 60416
        %787 = vst.msk [vmem:[#allocation5] sm:$0xf] %vm786, %v785
        %v788 = vld [vmem:[#allocation2] sm:$0xf]
        %v789 = vld [vmem:[#allocation3] sm:$0xf]
        %v791 = vunpack.c.l.b16 %v788
        %v792 = vpack.c.b16 %v791, %v791
        %793 = vrot.lane.b32.xlu0 %v792, 120
        %v794 = vpop.permute.xlu0 %793
        %v796 = vunpack.c.l.b16 %v789
        %v797 = vpack.c.b16 %v796, %v796
        %798 = vrot.lane.b32.xlu0 %v797, 120
        %v799 = vpop.permute.xlu0 %798
        %v801 = vsel %vm674, %v794, 0
        %v804 = vsel %vm674, %v799, 0
        %806 = vmatprep.subr.bf16.mxu0 0
        %807 = vmatpush1.bf16.xpose.msra.mxu0 %v804
        %808 = vmatprep.subr.bf16.mxu0 0
        %809 = vmatpush1.bf16.xpose.msra.mxu0 0
        %810 = vmatprep.subr.bf16.mxu0 0
        %811 = vmatpush1.bf16.xpose.msra.mxu0 0
        %812 = vmatprep.subr.bf16.mxu0 0
        %813 = vmatpush1.bf16.xpose.msra.mxu0 0
        %814 = vmatprep.subr.bf16.mxu0 0
        %815 = vmatpush1.bf16.xpose.msra.mxu0 0
        %816 = vmatprep.subr.bf16.mxu0 0
        %817 = vmatpush1.bf16.xpose.msra.mxu0 0
        %818 = vmatprep.subr.bf16.mxu0 0
        %819 = vmatpush1.bf16.xpose.msra.mxu0 0
        %820 = vmatprep.subr.bf16.mxu0 0
        %821 = vmatpush1.bf16.xpose.msra.mxu0 0
        %822 = vmatprep.subr.bf16.mxu0 0
        %823 = vmatpush1.bf16.xpose.msra.mxu0 0
        %824 = vmatprep.subr.bf16.mxu0 0
        %825 = vmatpush1.bf16.xpose.msra.mxu0 0
        %826 = vmatprep.subr.bf16.mxu0 0
        %827 = vmatpush1.bf16.xpose.msra.mxu0 0
        %828 = vmatprep.subr.bf16.mxu0 0
        %829 = vmatpush1.bf16.xpose.msra.mxu0 0
        %830 = vmatprep.subr.bf16.mxu0 0
        %831 = vmatpush1.bf16.xpose.msra.mxu0 0
        %832 = vmatprep.subr.bf16.mxu0 0
        %833 = vmatpush1.bf16.xpose.msra.mxu0 0
        %834 = vmatprep.subr.bf16.mxu0 0
        %835 = vmatpush1.bf16.xpose.msra.mxu0 0
        %836 = vmatprep.subr.bf16.mxu0 0
        %837 = vmatpush1.bf16.xpose.msra.mxu0 0
        %838 = vmatprep.mubr.bf16.mxu0 0
        %839 = vmatmul.mubr.bf16.gmra.mrb[0].mxu0 %v801
        %v840 = vpop.f32.mrb[0].mxu0
        %v841 = vadd.f32 0.0, %v840
        %v842 = vpop.f32.mrb[0].mxu0
        %v843 = vpop.f32.mrb[0].mxu0
        %v844 = vpop.f32.mrb[0].mxu0
        %845 = vdwg.mxu0
        %v846 = vmul.f32 %v841, 0.35355338
        %v847 = vsel %vm723, %v846, -1000000.0
        %v848 = vsel %vm674, %v847, -inf
        %849 = vmax.xlane.f32.xlu0 %v848
        %v850 = vpop.xlane.xlu0 %849
        %v851 = vsub.f32 %v847, %v850
        %v852 = vmul.f32 %v851, 1.442695
        %v853 = vpow.pop %v852
        %v854 = vsel %vm674, %v853, 0.0
        %855 = vadd.xlane.f32.xlu0 %v854
        %v856 = vpop.xlane.xlu0 %855
        %v857 = vrcp.pop %v856
        %v858 = vmul.f32 %v853, %v857
        %v859 = vpack.c.bf16 %v858, %v858
        %v860 = vld [vmem:[#allocation4] sm:$0xf]
        %v862 = vunpack.c.l.b16 %v860
        %v863 = vpack.c.b16 %v862, %v862
        %864 = vrot.lane.b32.xlu0 %v863, 120
        %v865 = vpop.permute.xlu0 %864
        %v867 = vsel %vm674, %v859, 0
        %v870 = vsel %vm741, %v865, 0
        %872 = vmatprep.subr.bf16.mxu0 0
        %873 = vmatpush1.bf16.msra.mxu0 %v870
        %874 = vmatprep.subr.bf16.mxu0 0
        %875 = vmatpush1.bf16.msra.mxu0 0
        %876 = vmatprep.subr.bf16.mxu0 0
        %877 = vmatpush1.bf16.msra.mxu0 0
        %878 = vmatprep.subr.bf16.mxu0 0
        %879 = vmatpush1.bf16.msra.mxu0 0
        %880 = vmatprep.subr.bf16.mxu0 0
        %881 = vmatpush1.bf16.msra.mxu0 0
        %882 = vmatprep.subr.bf16.mxu0 0
        %883 = vmatpush1.bf16.msra.mxu0 0
        %884 = vmatprep.subr.bf16.mxu0 0
        %885 = vmatpush1.bf16.msra.mxu0 0
        %886 = vmatprep.subr.bf16.mxu0 0
        %887 = vmatpush1.bf16.msra.mxu0 0
        %888 = vmatprep.subr.bf16.mxu0 0
        %889 = vmatpush1.bf16.msra.mxu0 0
        %890 = vmatprep.subr.bf16.mxu0 0
        %891 = vmatpush1.bf16.msra.mxu0 0
        %892 = vmatprep.subr.bf16.mxu0 0
        %893 = vmatpush1.bf16.msra.mxu0 0
        %894 = vmatprep.subr.bf16.mxu0 0
        %895 = vmatpush1.bf16.msra.mxu0 0
        %896 = vmatprep.subr.bf16.mxu0 0
        %897 = vmatpush1.bf16.msra.mxu0 0
        %898 = vmatprep.subr.bf16.mxu0 0
        %899 = vmatpush1.bf16.msra.mxu0 0
        %900 = vmatprep.subr.bf16.mxu0 0
        %901 = vmatpush1.bf16.msra.mxu0 0
        %902 = vmatprep.subr.bf16.mxu0 0
        %903 = vmatpush1.bf16.msra.mxu0 0
        %904 = vmatprep.mubr.bf16.mxu0 0
        %905 = vmatmul.mubr.bf16.gmra.mrb[0].mxu0 %v867
        %v906 = vpop.f32.mrb[0].mxu0
        %v907 = vadd.f32 0.0, %v906
        %v908 = vpop.f32.mrb[0].mxu0
        %v909 = vpop.f32.mrb[0].mxu0
        %v910 = vpop.f32.mrb[0].mxu0
        %911 = vdwg.mxu0
        %v912 = vpack.c.bf16 %v907, %v907
        %v914 = vunpack.c.l.b16 %v912
        %v915 = vpack.c.b16 %v914, %v914
        %916 = vrot.lane.b32.xlu0 %v915, 8
        %v917 = vpop.permute.xlu0 %916
        %vm919 = vcmask 126016
        %920 = vst.msk [vmem:[#allocation5] sm:$0xf] %vm919, %v917
        %v921 = vld [vmem:[#allocation2] sm:$0xf]
        %v922 = vld [vmem:[#allocation3] sm:$0xf]
        %v924 = vunpack.c.l.b16 %v921
        %v925 = vpack.c.b16 %v924, %v924
        %926 = vrot.lane.b32.xlu0 %v925, 112
        %v927 = vpop.permute.xlu0 %926
        %v929 = vunpack.c.l.b16 %v922
        %v930 = vpack.c.b16 %v929, %v929
        %931 = vrot.lane.b32.xlu0 %v930, 112
        %v932 = vpop.permute.xlu0 %931
        %v934 = vsel %vm674, %v927, 0
        %v937 = vsel %vm674, %v932, 0
        %939 = vmatprep.subr.bf16.mxu0 0
        %940 = vmatpush1.bf16.xpose.msra.mxu0 %v937
        %941 = vmatprep.subr.bf16.mxu0 0
        %942 = vmatpush1.bf16.xpose.msra.mxu0 0
        %943 = vmatprep.subr.bf16.mxu0 0
        %944 = vmatpush1.bf16.xpose.msra.mxu0 0
        %945 = vmatprep.subr.bf16.mxu0 0
        %946 = vmatpush1.bf16.xpose.msra.mxu0 0
        %947 = vmatprep.subr.bf16.mxu0 0
        %948 = vmatpush1.bf16.xpose.msra.mxu0 0
        %949 = vmatprep.subr.bf16.mxu0 0
        %950 = vmatpush1.bf16.xpose.msra.mxu0 0
        %951 = vmatprep.subr.bf16.mxu0 0
        %952 = vmatpush1.bf16.xpose.msra.mxu0 0
        %953 = vmatprep.subr.bf16.mxu0 0
        %954 = vmatpush1.bf16.xpose.msra.mxu0 0
        %955 = vmatprep.subr.bf16.mxu0 0
        %956 = vmatpush1.bf16.xpose.msra.mxu0 0
        %957 = vmatprep.subr.bf16.mxu0 0
        %958 = vmatpush1.bf16.xpose.msra.mxu0 0
        %959 = vmatprep.subr.bf16.mxu0 0
        %960 = vmatpush1.bf16.xpose.msra.mxu0 0
        %961 = vmatprep.subr.bf16.mxu0 0
        %962 = vmatpush1.bf16.xpose.msra.mxu0 0
        %963 = vmatprep.subr.bf16.mxu0 0
        %964 = vmatpush1.bf16.xpose.msra.mxu0 0
        %965 = vmatprep.subr.bf16.mxu0 0
        %966 = vmatpush1.bf16.xpose.msra.mxu0 0
        %967 = vmatprep.subr.bf16.mxu0 0
        %968 = vmatpush1.bf16.xpose.msra.mxu0 0
        %969 = vmatprep.subr.bf16.mxu0 0
        %970 = vmatpush1.bf16.xpose.msra.mxu0 0
        %971 = vmatprep.mubr.bf16.mxu0 0
        %972 = vmatmul.mubr.bf16.gmra.mrb[0].mxu0 %v934
        %v973 = vpop.f32.mrb[0].mxu0
        %v974 = vadd.f32 0.0, %v973
        %v975 = vpop.f32.mrb[0].mxu0
        %v976 = vpop.f32.mrb[0].mxu0
        %v977 = vpop.f32.mrb[0].mxu0
        %978 = vdwg.mxu0
        %v979 = vmul.f32 %v974, 0.35355338
        %v980 = vsel %vm723, %v979, -1000000.0
        %v981 = vsel %vm674, %v980, -inf
        %982 = vmax.xlane.f32.xlu0 %v981
        %v983 = vpop.xlane.xlu0 %982
        %v984 = vsub.f32 %v980, %v983
        %v985 = vmul.f32 %v984, 1.442695
        %v986 = vpow.pop %v985
        %v987 = vsel %vm674, %v986, 0.0
        %988 = vadd.xlane.f32.xlu0 %v987
        %v989 = vpop.xlane.xlu0 %988
        %v990 = vrcp.pop %v989
        %v991 = vmul.f32 %v986, %v990
        %v992 = vpack.c.bf16 %v991, %v991
        %v993 = vld [vmem:[#allocation4] sm:$0xf]
        %v995 = vunpack.c.l.b16 %v993
        %v996 = vpack.c.b16 %v995, %v995
        %997 = vrot.lane.b32.xlu0 %v996, 112
        %v998 = vpop.permute.xlu0 %997
        %v1000 = vsel %vm674, %v992, 0
        %v1003 = vsel %vm741, %v998, 0
        %1005 = vmatprep.subr.bf16.mxu0 0
        %1006 = vmatpush1.bf16.msra.mxu0 %v1003
        %1007 = vmatprep.subr.bf16.mxu0 0
        %1008 = vmatpush1.bf16.msra.mxu0 0
        %1009 = vmatprep.subr.bf16.mxu0 0
        %1010 = vmatpush1.bf16.msra.mxu0 0
        %1011 = vmatprep.subr.bf16.mxu0 0
        %1012 = vmatpush1.bf16.msra.mxu0 0
        %1013 = vmatprep.subr.bf16.mxu0 0
        %1014 = vmatpush1.bf16.msra.mxu0 0
        %1015 = vmatprep.subr.bf16.mxu0 0
        %1016 = vmatpush1.bf16.msra.mxu0 0
        %1017 = vmatprep.subr.bf16.mxu0 0
        %1018 = vmatpush1.bf16.msra.mxu0 0
        %1019 = vmatprep.subr.bf16.mxu0 0
        %1020 = vmatpush1.bf16.msra.mxu0 0
        %1021 = vmatprep.subr.bf16.mxu0 0
        %1022 = vmatpush1.bf16.msra.mxu0 0
        %1023 = vmatprep.subr.bf16.mxu0 0
        %1024 = vmatpush1.bf16.msra.mxu0 0
        %1025 = vmatprep.subr.bf16.mxu0 0
        %1026 = vmatpush1.bf16.msra.mxu0 0
        %1027 = vmatprep.subr.bf16.mxu0 0
        %1028 = vmatpush1.bf16.msra.mxu0 0
        %1029 = vmatprep.subr.bf16.mxu0 0
        %1030 = vmatpush1.bf16.msra.mxu0 0
        %1031 = vmatprep.subr.bf16.mxu0 0
        %1032 = vmatpush1.bf16.msra.mxu0 0
        %1033 = vmatprep.subr.bf16.mxu0 0
        %1034 = vmatpush1.bf16.msra.mxu0 0
        %1035 = vmatprep.subr.bf16.mxu0 0
        %1036 = vmatpush1.bf16.msra.mxu0 0
        %1037 = vmatprep.mubr.bf16.mxu0 0
        %1038 = vmatmul.mubr.bf16.gmra.mrb[0].mxu0 %v1000
        %v1039 = vpop.f32.mrb[0].mxu0
        %v1040 = vadd.f32 0.0, %v1039
        %v1041 = vpop.f32.mrb[0].mxu0
        %v1042 = vpop.f32.mrb[0].mxu0
        %v1043 = vpop.f32.mrb[0].mxu0
        %1044 = vdwg.mxu0
        %v1045 = vpack.c.bf16 %v1040, %v1040
        %v1047 = vunpack.c.l.b16 %v1045
        %v1048 = vpack.c.b16 %v1047, %v1047
        %1049 = vrot.lane.b32.xlu0 %v1048, 16
        %v1050 = vpop.permute.xlu0 %1049
        %vm1052 = vcmask 191616
        %1053 = vst.msk [vmem:[#allocation5] sm:$0xf] %vm1052, %v1050
        %v1054 = vld [vmem:[#allocation2] sm:$0xf]
        %v1055 = vld [vmem:[#allocation3] sm:$0xf]
        %v1057 = vunpack.c.l.b16 %v1054
        %v1058 = vpack.c.b16 %v1057, %v1057
        %1059 = vrot.lane.b32.xlu0 %v1058, 104
        %v1060 = vpop.permute.xlu0 %1059
        %v1062 = vunpack.c.l.b16 %v1055
        %v1063 = vpack.c.b16 %v1062, %v1062
        %1064 = vrot.lane.b32.xlu0 %v1063, 104
        %v1065 = vpop.permute.xlu0 %1064
        %v1067 = vsel %vm674, %v1060, 0
        %v1070 = vsel %vm674, %v1065, 0
        %1072 = vmatprep.subr.bf16.mxu0 0
        %1073 = vmatpush1.bf16.xpose.msra.mxu0 %v1070
        %1074 = vmatprep.subr.bf16.mxu0 0
        %1075 = vmatpush1.bf16.xpose.msra.mxu0 0
        %1076 = vmatprep.subr.bf16.mxu0 0
        %1077 = vmatpush1.bf16.xpose.msra.mxu0 0
        %1078 = vmatprep.subr.bf16.mxu0 0
        %1079 = vmatpush1.bf16.xpose.msra.mxu0 0
        %1080 = vmatprep.subr.bf16.mxu0 0
        %1081 = vmatpush1.bf16.xpose.msra.mxu0 0
        %1082 = vmatprep.subr.bf16.mxu0 0
        %1083 = vmatpush1.bf16.xpose.msra.mxu0 0
        %1084 = vmatprep.subr.bf16.mxu0 0
        %1085 = vmatpush1.bf16.xpose.msra.mxu0 0
        %1086 = vmatprep.subr.bf16.mxu0 0
        %1087 = vmatpush1.bf16.xpose.msra.mxu0 0
        %1088 = vmatprep.subr.bf16.mxu0 0
        %1089 = vmatpush1.bf16.xpose.msra.mxu0 0
        %1090 = vmatprep.subr.bf16.mxu0 0
        %1091 = vmatpush1.bf16.xpose.msra.mxu0 0
        %1092 = vmatprep.subr.bf16.mxu0 0
        %1093 = vmatpush1.bf16.xpose.msra.mxu0 0
        %1094 = vmatprep.subr.bf16.mxu0 0
        %1095 = vmatpush1.bf16.xpose.msra.mxu0 0
        %1096 = vmatprep.subr.bf16.mxu0 0
        %1097 = vmatpush1.bf16.xpose.msra.mxu0 0
        %1098 = vmatprep.subr.bf16.mxu0 0
        %1099 = vmatpush1.bf16.xpose.msra.mxu0 0
        %1100 = vmatprep.subr.bf16.mxu0 0
        %1101 = vmatpush1.bf16.xpose.msra.mxu0 0
        %1102 = vmatprep.subr.bf16.mxu0 0
        %1103 = vmatpush1.bf16.xpose.msra.mxu0 0
        %1104 = vmatprep.mubr.bf16.mxu0 0
        %1105 = vmatmul.mubr.bf16.gmra.mrb[0].mxu0 %v1067
        %v1106 = vpop.f32.mrb[0].mxu0
        %v1107 = vadd.f32 0.0, %v1106
        %v1108 = vpop.f32.mrb[0].mxu0
        %v1109 = vpop.f32.mrb[0].mxu0
        %v1110 = vpop.f32.mrb[0].mxu0
        %1111 = vdwg.mxu0
        %v1112 = vmul.f32 %v1107, 0.35355338
        %v1113 = vsel %vm723, %v1112, -1000000.0
        %v1114 = vsel %vm674, %v1113, -inf
        %1115 = vmax.xlane.f32.xlu0 %v1114
        %v1116 = vpop.xlane.xlu0 %1115
        %v1117 = vsub.f32 %v1113, %v1116
        %v1118 = vmul.f32 %v1117, 1.442695
        %v1119 = vpow.pop %v1118
        %v1120 = vsel %vm674, %v1119, 0.0
        %1121 = vadd.xlane.f32.xlu0 %v1120
        %v1122 = vpop.xlane.xlu0 %1121
        %v1123 = vrcp.pop %v1122
        %v1124 = vmul.f32 %v1119, %v1123
        %v1125 = vpack.c.bf16 %v1124, %v1124
        %v1126 = vld [vmem:[#allocation4] sm:$0xf]
        %v1128 = vunpack.c.l.b16 %v1126
        %v1129 = vpack.c.b16 %v1128, %v1128
        %1130 = vrot.lane.b32.xlu0 %v1129, 104
        %v1131 = vpop.permute.xlu0 %1130
        %v1133 = vsel %vm674, %v1125, 0
        %v1136 = vsel %vm741, %v1131, 0
        %1138 = vmatprep.subr.bf16.mxu0 0
        %1139 = vmatpush1.bf16.msra.mxu0 %v1136
        %1140 = vmatprep.subr.bf16.mxu0 0
        %1141 = vmatpush1.bf16.msra.mxu0 0
        %1142 = vmatprep.subr.bf16.mxu0 0
        %1143 = vmatpush1.bf16.msra.mxu0 0
        %1144 = vmatprep.subr.bf16.mxu0 0
        %1145 = vmatpush1.bf16.msra.mxu0 0
        %1146 = vmatprep.subr.bf16.mxu0 0
        %1147 = vmatpush1.bf16.msra.mxu0 0
        %1148 = vmatprep.subr.bf16.mxu0 0
        %1149 = vmatpush1.bf16.msra.mxu0 0
        %1150 = vmatprep.subr.bf16.mxu0 0
        %1151 = vmatpush1.bf16.msra.mxu0 0
        %1152 = vmatprep.subr.bf16.mxu0 0
        %1153 = vmatpush1.bf16.msra.mxu0 0
        %1154 = vmatprep.subr.bf16.mxu0 0
        %1155 = vmatpush1.bf16.msra.mxu0 0
        %1156 = vmatprep.subr.bf16.mxu0 0
        %1157 = vmatpush1.bf16.msra.mxu0 0
        %1158 = vmatprep.subr.bf16.mxu0 0
        %1159 = vmatpush1.bf16.msra.mxu0 0
        %1160 = vmatprep.subr.bf16.mxu0 0
        %1161 = vmatpush1.bf16.msra.mxu0 0
        %1162 = vmatprep.subr.bf16.mxu0 0
        %1163 = vmatpush1.bf16.msra.mxu0 0
        %1164 = vmatprep.subr.bf16.mxu0 0
        %1165 = vmatpush1.bf16.msra.mxu0 0
        %1166 = vmatprep.subr.bf16.mxu0 0
        %1167 = vmatpush1.bf16.msra.mxu0 0
        %1168 = vmatprep.subr.bf16.mxu0 0
        %1169 = vmatpush1.bf16.msra.mxu0 0
        %1170 = vmatprep.mubr.bf16.mxu0 0
        %1171 = vmatmul.mubr.bf16.gmra.mrb[0].mxu0 %v1133
        %v1172 = vpop.f32.mrb[0].mxu0
        %v1173 = vadd.f32 0.0, %v1172
        %v1174 = vpop.f32.mrb[0].mxu0
        %v1175 = vpop.f32.mrb[0].mxu0
        %v1176 = vpop.f32.mrb[0].mxu0
        %1177 = vdwg.mxu0
        %v1178 = vpack.c.bf16 %v1173, %v1173
        %v1180 = vunpack.c.l.b16 %v1178
        %v1181 = vpack.c.b16 %v1180, %v1180
        %1182 = vrot.lane.b32.xlu0 %v1181, 24
        %v1183 = vpop.permute.xlu0 %1182
        %vm1185 = vcmask 257216
        %1186 = vst.msk [vmem:[#allocation5] sm:$0xf] %vm1185, %v1183
        %v1187 = vld [vmem:[#allocation5] sm:$0xf]
        %v1188 = vld [vmem:[#allocation11] sm:$0xf]
        %v1189 = vld [vmem:[#allocation11 + $0x4] sm:$0xf]
        %v1190 = vld [vmem:[#allocation11 + $0x8] sm:$0xf]
        %v1191 = vld [vmem:[#allocation11 + $0xc] sm:$0xf]
        %v1196 = vunpack.c.l.b16 %v1188
        %v1197 = vunpack.c.l.b16 %v1189
        %v1198 = vunpack.c.l.b16 %v1190
        %v1199 = vunpack.c.l.b16 %v1191
        %v1200 = vpack.c.b16 %v1197, %v1196
        %v1201 = vpack.c.b16 %v1199, %v1198
        %v1205 = vsel %vm504, %v1187, 0
        %1207 = vmatprep.subr.bf16.mxu0 0
        %1208 = vmatpush1.bf16.msra.mxu0 %v1200
        %1209 = vmatprep.subr.bf16.mxu0 0
        %1210 = vmatpush1.bf16.msra.mxu0 %v1201
        %1211 = vmatprep.subr.bf16.mxu0 0
        %1212 = vmatpush1.bf16.msra.mxu0 0
        %1213 = vmatprep.subr.bf16.mxu0 0
        %1214 = vmatpush1.bf16.msra.mxu0 0
        %1215 = vmatprep.subr.bf16.mxu0 0
        %1216 = vmatpush1.bf16.msra.mxu0 0
        %1217 = vmatprep.subr.bf16.mxu0 0
        %1218 = vmatpush1.bf16.msra.mxu0 0
        %1219 = vmatprep.subr.bf16.mxu0 0
        %1220 = vmatpush1.bf16.msra.mxu0 0
        %1221 = vmatprep.subr.bf16.mxu0 0
        %1222 = vmatpush1.bf16.msra.mxu0 0
        %1223 = vmatprep.subr.bf16.mxu0 0
        %1224 = vmatpush1.bf16.msra.mxu0 0
        %1225 = vmatprep.subr.bf16.mxu0 0
        %1226 = vmatpush1.bf16.msra.mxu0 0
        %1227 = vmatprep.subr.bf16.mxu0 0
        %1228 = vmatpush1.bf16.msra.mxu0 0
        %1229 = vmatprep.subr.bf16.mxu0 0
        %1230 = vmatpush1.bf16.msra.mxu0 0
        %1231 = vmatprep.subr.bf16.mxu0 0
        %1232 = vmatpush1.bf16.msra.mxu0 0
        %1233 = vmatprep.subr.bf16.mxu0 0
        %1234 = vmatpush1.bf16.msra.mxu0 0
        %1235 = vmatprep.subr.bf16.mxu0 0
        %1236 = vmatpush1.bf16.msra.mxu0 0
        %1237 = vmatprep.subr.bf16.mxu0 0
        %1238 = vmatpush1.bf16.msra.mxu0 0
        %1239 = vmatprep.mubr.bf16.mxu0 0
        %1240 = vmatmul.mubr.bf16.gmra.mrb[0].mxu0 %v1205
        %v1241 = vpop.f32.mrb[0].mxu0
        %v1242 = vadd.f32 %v486, %v1241
        %v1243 = vpop.f32.mrb[0].mxu0
        %v1244 = vpop.f32.mrb[0].mxu0
        %v1245 = vpop.f32.mrb[0].mxu0
        %1246 = vdwg.mxu0
        %v1247 = vld [vmem:[%s6] sm:$0x1]
        %v1248 = vld [vmem:[%s7] sm:$0x1]
        %v1249 = vsel %vm504, %v1242, 0.0
        %1250 = vadd.xlane.f32.xlu0 %v1249
        %v1251 = vpop.xlane.xlu0 %1250
        %v1252 = vrcp.pop 32.0
        %v1253 = vmul.f32 %v1251, %v1252
        %v1254 = vsub.f32 %v1242, %v1253
        %v1255 = vmul.f32 %v1254, %v1254
        %v1256 = vsel %vm504, %v1255, 0.0
        %1257 = vadd.xlane.f32.xlu0 %v1256
        %v1258 = vpop.xlane.xlu0 %1257
        %v1259 = vmul.f32 %v1258, %v1252
        %v1260 = vadd.f32 %v1259, 1e-05
        %v1261 = vrsqrt.pop %v1260
        %v1262 = vmul.f32 %v1254, %v1261
        %v1264 = vlaneseq
        %v1265 = vshrl.u32 %v1264, 7
        %v1266 = vsub.s32 0, %v1265
        %v1267 = vrot.slane %v1247, %v1266
        %v1269 = vmul.f32 %v1262, %v1267
        %v1271 = vlaneseq
        %v1272 = vshrl.u32 %v1271, 7
        %v1273 = vsub.s32 0, %v1272
        %v1274 = vrot.slane %v1248, %v1273
        %v1276 = vadd.f32 %v1269, %v1274
        %v1277 = vpack.c.bf16 %v1276, %v1276
        %v1278 = vld [vmem:[#allocation13] sm:$0xf]
        %v1279 = vld [vmem:[#allocation13 + $0x4] sm:$0xf]
        %v1280 = vld [vmem:[#allocation13 + $0x8] sm:$0xf]
        %v1281 = vld [vmem:[#allocation13 + $0xc] sm:$0xf]
        %v1282 = vld [vmem:[%s9] sm:$0x1]
        %v1284 = vlaneseq
        %v1285 = vshrl.u32 %v1284, 7
        %v1286 = vsub.s32 0, %v1285
        %v1287 = vrot.slane %v1282, %v1286
        %v1293 = vunpack.c.l.b16 %v1278
        %v1294 = vunpack.c.l.b16 %v1279
        %v1295 = vunpack.c.l.b16 %v1280
        %v1296 = vunpack.c.l.b16 %v1281
        %v1297 = vpack.c.b16 %v1294, %v1293
        %v1298 = vpack.c.b16 %v1296, %v1295
        %v1302 = vsel %vm504, %v1277, 0
        %1304 = vmatprep.subr.bf16.mxu0 0
        %1305 = vmatpush1.bf16.msra.mxu0 %v1297
        %1306 = vmatprep.subr.bf16.mxu0 0
        %1307 = vmatpush1.bf16.msra.mxu0 %v1298
        %1308 = vmatprep.subr.bf16.mxu0 0
        %1309 = vmatpush1.bf16.msra.mxu0 0
        %1310 = vmatprep.subr.bf16.mxu0 0
        %1311 = vmatpush1.bf16.msra.mxu0 0
        %1312 = vmatprep.subr.bf16.mxu0 0
        %1313 = vmatpush1.bf16.msra.mxu0 0
        %1314 = vmatprep.subr.bf16.mxu0 0
        %1315 = vmatpush1.bf16.msra.mxu0 0
        %1316 = vmatprep.subr.bf16.mxu0 0
        %1317 = vmatpush1.bf16.msra.mxu0 0
        %1318 = vmatprep.subr.bf16.mxu0 0
        %1319 = vmatpush1.bf16.msra.mxu0 0
        %1320 = vmatprep.subr.bf16.mxu0 0
        %1321 = vmatpush1.bf16.msra.mxu0 0
        %1322 = vmatprep.subr.bf16.mxu0 0
        %1323 = vmatpush1.bf16.msra.mxu0 0
        %1324 = vmatprep.subr.bf16.mxu0 0
        %1325 = vmatpush1.bf16.msra.mxu0 0
        %1326 = vmatprep.subr.bf16.mxu0 0
        %1327 = vmatpush1.bf16.msra.mxu0 0
        %1328 = vmatprep.subr.bf16.mxu0 0
        %1329 = vmatpush1.bf16.msra.mxu0 0
        %1330 = vmatprep.subr.bf16.mxu0 0
        %1331 = vmatpush1.bf16.msra.mxu0 0
        %1332 = vmatprep.subr.bf16.mxu0 0
        %1333 = vmatpush1.bf16.msra.mxu0 0
        %1334 = vmatprep.subr.bf16.mxu0 0
        %1335 = vmatpush1.bf16.msra.mxu0 0
        %1336 = vmatprep.mubr.bf16.mxu0 0
        %1337 = vmatmul.mubr.bf16.gmra.mrb[0].mxu0 %v1302
        %v1338 = vpop.f32.mrb[0].mxu0
        %v1339 = vadd.f32 %v1287, %v1338
        %v1340 = vpop.f32.mrb[0].mxu0
        %v1341 = vpop.f32.mrb[0].mxu0
        %v1342 = vpop.f32.mrb[0].mxu0
        %1343 = vdwg.mxu0
        %v1344 = vmax.f32 %v1339, 0.0
        %v1345 = vpack.c.bf16 %v1344, %v1344
        %v1346 = vld [vmem:[%s10] sm:$0xf]
        %v1347 = vld [vmem:[%s10 + $0x4] sm:$0xf]
        %v1348 = vld [vmem:[%s10 + $0x8] sm:$0xf]
        %v1349 = vld [vmem:[%s10 + $0xc] sm:$0xf]
        %v1350 = vld [vmem:[%s10 + $0x10] sm:$0xf]
        %v1351 = vld [vmem:[%s10 + $0x14] sm:$0xf]
        %v1352 = vld [vmem:[%s10 + $0x18] sm:$0xf]
        %v1353 = vld [vmem:[%s10 + $0x1c] sm:$0xf]
        %v1354 = vld [vmem:[%s11] sm:$0x1]
        %v1356 = vlaneseq
        %v1357 = vshrl.u32 %v1356, 7
        %v1358 = vsub.s32 0, %v1357
        %v1359 = vrot.slane %v1354, %v1358
        %v1369 = vunpack.c.l.b16 %v1346
        %v1370 = vunpack.c.l.b16 %v1347
        %v1371 = vunpack.c.l.b16 %v1348
        %v1372 = vunpack.c.l.b16 %v1349
        %v1373 = vunpack.c.l.b16 %v1350
        %v1374 = vunpack.c.l.b16 %v1351
        %v1375 = vunpack.c.l.b16 %v1352
        %v1376 = vunpack.c.l.b16 %v1353
        %v1377 = vpack.c.b16 %v1370, %v1369
        %v1378 = vpack.c.b16 %v1372, %v1371
        %v1379 = vpack.c.b16 %v1374, %v1373
        %v1380 = vpack.c.b16 %v1376, %v1375
        %vm1385 = vcmask 523264
        %v1387 = vsel %vm1385, %v1345, 0
        %1389 = vmatprep.subr.bf16.mxu0 0
        %1390 = vmatpush1.bf16.msra.mxu0 %v1377
        %1391 = vmatprep.subr.bf16.mxu0 0
        %1392 = vmatpush1.bf16.msra.mxu0 %v1378
        %1393 = vmatprep.subr.bf16.mxu0 0
        %1394 = vmatpush1.bf16.msra.mxu0 %v1379
        %1395 = vmatprep.subr.bf16.mxu0 0
        %1396 = vmatpush1.bf16.msra.mxu0 %v1380
        %1397 = vmatprep.subr.bf16.mxu0 0
        %1398 = vmatpush1.bf16.msra.mxu0 0
        %1399 = vmatprep.subr.bf16.mxu0 0
        %1400 = vmatpush1.bf16.msra.mxu0 0
        %1401 = vmatprep.subr.bf16.mxu0 0
        %1402 = vmatpush1.bf16.msra.mxu0 0
        %1403 = vmatprep.subr.bf16.mxu0 0
        %1404 = vmatpush1.bf16.msra.mxu0 0
        %1405 = vmatprep.subr.bf16.mxu0 0
        %1406 = vmatpush1.bf16.msra.mxu0 0
        %1407 = vmatprep.subr.bf16.mxu0 0
        %1408 = vmatpush1.bf16.msra.mxu0 0
        %1409 = vmatprep.subr.bf16.mxu0 0
        %1410 = vmatpush1.bf16.msra.mxu0 0
        %1411 = vmatprep.subr.bf16.mxu0 0
        %1412 = vmatpush1.bf16.msra.mxu0 0
        %1413 = vmatprep.subr.bf16.mxu0 0
        %1414 = vmatpush1.bf16.msra.mxu0 0
        %1415 = vmatprep.subr.bf16.mxu0 0
        %1416 = vmatpush1.bf16.msra.mxu0 0
        %1417 = vmatprep.subr.bf16.mxu0 0
        %1418 = vmatpush1.bf16.msra.mxu0 0
        %1419 = vmatprep.subr.bf16.mxu0 0
        %1420 = vmatpush1.bf16.msra.mxu0 0
        %1421 = vmatprep.mubr.bf16.mxu0 0
        %1422 = vmatmul.mubr.bf16.gmra.mrb[0].mxu0 %v1387
        %v1423 = vpop.f32.mrb[0].mxu0
        %v1424 = vadd.f32 %v1359, %v1423
        %v1425 = vpop.f32.mrb[0].mxu0
        %v1426 = vpop.f32.mrb[0].mxu0
        %v1427 = vpop.f32.mrb[0].mxu0
        %1428 = vdwg.mxu0
        %v1429 = vadd.f32 %v1424, %v1276
        %v1430 = vld [vmem:[%s12] sm:$0x1]
        %v1431 = vld [vmem:[%s13] sm:$0x1]
        %v1432 = vsel %vm504, %v1429, 0.0
        %1433 = vadd.xlane.f32.xlu0 %v1432
        %v1434 = vpop.xlane.xlu0 %1433
        %v1435 = vmul.f32 %v1434, %v1252
        %v1436 = vsub.f32 %v1429, %v1435
        %v1437 = vmul.f32 %v1436, %v1436
        %v1438 = vsel %vm504, %v1437, 0.0
        %1439 = vadd.xlane.f32.xlu0 %v1438
        %v1440 = vpop.xlane.xlu0 %1439
        %v1441 = vmul.f32 %v1440, %v1252
        %v1442 = vadd.f32 %v1441, 1e-05
        %v1443 = vrsqrt.pop %v1442
        %v1444 = vmul.f32 %v1436, %v1443
        %v1446 = vlaneseq
        %v1447 = vshrl.u32 %v1446, 7
        %v1448 = vsub.s32 0, %v1447
        %v1449 = vrot.slane %v1430, %v1448
        %v1451 = vmul.f32 %v1444, %v1449
        %v1453 = vlaneseq
        %v1454 = vshrl.u32 %v1453, 7
        %v1455 = vsub.s32 0, %v1454
        %v1456 = vrot.slane %v1431, %v1455
        %v1458 = vadd.f32 %v1451, %v1456
        %1459 = vst.msk [vmem:[%s480] sm:$0xff] %vm504, %v1458
        %s1460 = sand.u32 %s320, 1
        %s1461 = scalar_lea.sflag [#allocation10], %s1460
        %s1462 = sand.u32 %s320, 1
        %s1463 = smul.addr %s1462, 8
        %s1464 = scalar_lea.vmem [#allocation14], %s1463
        // Predicated region
        $region85: #{tpu_custom_call.1} parent=71 // pred_check
          %p1465 = pneg %p330
        $region86: #{tpu_custom_call.1} parent=71 // pred_check_branch
          %1467 = sbr.rel (%p1465) target = $region88
        $region87: #{tpu_custom_call.1} parent=71 // pred_region
          %s1469 = ssub.s32 128, 128
          %1470 = vsyncadd %s1461, %s1469
          %s1471 = smul.addr %s34, 128
          %s1472 = scalar_lea.hbm %s14, %s1471
          %s1474 = sshll.u32 %s1464, 4
          %s1475 = int_to_ptr.vmem [resolvable:$true] %s1474
          %1477 = dma.vmem_to_hbm [thread:$0]  %s1475, 128, %s1472, %s1461
        $region88: #{tpu_custom_call.1} parent=71 // pred_fallthru
          _
      $region72: #{tpu_custom_call.1} parent=5 // pred_fallthru
        _
      %p1478 = scmp.le.s32.totalorder 2, %s29
      // Predicated region
      $region89: #{tpu_custom_call.1} parent=5 // pred_check
        %p1479 = pneg %p1478
      $region90: #{tpu_custom_call.1} parent=5 // pred_check_branch
        %1481 = sbr.rel (%p1479) target = $region92
      $region91: #{tpu_custom_call.1} parent=5 // pred_region
        %s1482 = ssub.s32 %s29, 2
        // Predicated region
        $region93: #{tpu_custom_call.1} parent=91 // pred_check
          %p1483 = pneg %p336
        $region94: #{tpu_custom_call.1} parent=91 // pred_check_branch
          %1485 = sbr.rel (%p1483) target = $region96
        $region95: #{tpu_custom_call.1} parent=91 // pred_region
          %s1486 = sand.u32 %s321, 1
          %s1487 = scalar_lea.sflag [#allocation10], %s1486
          %s1488 = sand.u32 %s321, 1
          %s1489 = smul.addr %s1488, 8
          %s1490 = scalar_lea.vmem [#allocation14], %s1489
          %1491 = dma.done %s1487, 128
        $region96: #{tpu_custom_call.1} parent=91 // pred_fallthru
          _
      $region92: #{tpu_custom_call.1} parent=5 // pred_fallthru
        _
    $region6: #{tpu_custom_call.1} parent=1 // loop_footer
      %s33 = sadd.s32 1, %s29
    $region7: #{tpu_custom_call.1} parent=1 // loop_footer_branch
      %28 = sbr.rel target = $region3
    $region8: #{tpu_custom_call.1} parent=1 // loop_exit
      _
    %1492 = vsyncpa [#allocation9], 1
    %s1493 = scalar_lea.sflag [#allocation9], 1
    %1494 = vsyncpa %s1493, 1
    %1495 = vsyncpa [#allocation12], 1
    %1496 = vsyncpa [#allocation10], 1
    %s1497 = scalar_lea.sflag [#allocation10], 1
    %1498 = vsyncpa %s1497, 1

</llo_original>
